<compile_context>
chip_gen: v7x
topology: tpu7x:2x2x1
jax: 0.10.0
libtpu: 0.0.40
codegen_flags: <defaults>
</compile_context>

<pallas_src>
import functools

import jax
import jax.numpy as jnp
from jax.experimental import pallas as pl
from jax.experimental.pallas import tpu as pltpu

KSIZES = (3, 5, 7, 9)     # conv kernel heights (over the word axis)
KMAX = KSIZES[-1]         # 9 taps in the fused window
MAXPAD = KMAX // 2        # 4
# im2col column (tap) order: the 5 central taps used by {k=3,k=5} come first so that
# group A can read a contiguous prefix of the im2col buffer; group B (k=7,k=9) reads
# all 9 taps with its weight rows permuted to match.
TAP_ORDER = (2, 3, 4, 5, 6, 0, 1, 7, 8)
NA = 5                    # taps consumed by group A


def _round_up(n, m):
    return (n + m - 1) // m * m


def _pick_tb(B, L, D, C, in_bpe, out_bpe, *, m_target=512, vmem_budget=40 << 20):
    """Batch tile: fill the MXU M-dim (~m_target rows on v6e/v7x's 256-wide MXU),
    stay inside a conservative VMEM budget, and prefer an even number of grid steps
    so both v7x TensorCores get work.  Non-divisor B is padded in the wrapper."""
    Lp = _round_up(L + 2 * MAXPAD, 8)

    def vmem_est(tb):
        w = (NA + KMAX) * D * (C // 2) * in_bpe * 2        # fused weights (double-buffered)
        xin = tb * L * D * in_bpe * 2                       # input tile (double-buffered)
        pad = tb * Lp * D * in_bpe                          # xpad scratch
        im2col = tb * L * KMAX * D * in_bpe                 # im2col scratch
        outs = tb * (L + 1) * C * out_bpe * 2               # words + question (double-buffered)
        return w + xin + pad + im2col + outs

    tb = max(1, min(B, -(-m_target // L)))
    while tb > 1 and vmem_est(tb) > vmem_budget:
        tb -= 1
    steps = -(-B // tb)
    # Megacore: prefer an even step count (>=2) as long as M = TB*L stays MXU-friendly.
    if steps % 2 == 1 and B > 1:
        tb_even = -(-B // (steps + 1))
        if tb_even >= 1 and tb_even * L >= 128 and vmem_est(tb_even) <= vmem_budget:
            tb = tb_even
    return tb


def _fuse_weights(weights, biases):
    """Build the two im2col weight matrices and the fused bias.

    Group A = {k=3, k=5} -> (NA*D, 2*Cq), consuming taps TAP_ORDER[:NA].
    Group B = {k=7, k=9} -> (KMAX*D, 2*Cq), consuming all taps in TAP_ORDER order.
    Channel order is [k3 | k5 | k7 | k9], matching torch's cat order.
    """
    D, Cq = weights[0].shape[1:]

    def group(ws, ks, taps):
        rows = []
        for t in taps:
            cols = []
            for w, k in zip(ws, ks):
                off = MAXPAD - k // 2
                if off <= t < off + k:
                    cols.append(w[t - off])                       # (D, Cq)
                else:
                    cols.append(jnp.zeros((D, Cq), w.dtype))      # zero tap-block
            rows.append(jnp.concatenate(cols, axis=-1))           # (D, 2*Cq)
        return jnp.concatenate(rows, axis=0)                      # (len(taps)*D, 2*Cq)

    wa = group(weights[:2], KSIZES[:2], TAP_ORDER[:NA])
    wb = group(weights[2:], KSIZES[2:], TAP_ORDER)
    b_fused = jnp.concatenate(biases, axis=-1)                    # (1, C), stays f32
    return wa, wb, b_fused


def _cnn_question_kernel(x_ref, wa_ref, wb_ref, b_ref, words_ref, question_ref,
                         xpad_ref, x2_ref, *, TB, L, Lp, compute_dtype):
    """Per-batch-tile body.

    x_ref        : (TB, L, D)        word embeddings for this batch tile
    wa_ref       : (NA*D, 2*Cq)      fused weights for {k=3,k=5}
    wb_ref       : (KMAX*D, 2*Cq)    fused weights for {k=7,k=9}
    b_ref        : (1, C)            fused conv biases (f32)
    words_ref    : (TB, L, C)        per-word features
    question_ref : (TB, 1, C)        max-over-words features
    xpad_ref     : (TB, Lp, D)       VMEM scratch, word axis zero-padded by MAXPAD
    x2_ref       : (TB*L, KMAX*D)    VMEM im2col scratch
    """
    D = x_ref.shape[-1]
    C = b_ref.shape[-1]

    # In-kernel zero padding.  The pad strips are (re)zeroed every step: with the
    # 'parallel' grid axis sharded across TensorCores each core has its own scratch,
    # so a program_id==0-only init would leave one core's padding uninitialised.
    # (Strips are tiny: 2 * TB * ~4 * D elements per step.)
    xpad_ref[:, :MAXPAD, :] = jnp.zeros((TB, MAXPAD, D), compute_dtype)
    xpad_ref[:, MAXPAD + L:, :] = jnp.zeros((TB, Lp - MAXPAD - L, D), compute_dtype)
    xpad_ref[:, MAXPAD:MAXPAD + L, :] = x_ref[...].astype(compute_dtype)

    # im2col: 9 shifted copies of the padded words, tap order puts group A's taps first.
    for p, t in enumerate(TAP_ORDER):
        x2_ref[:, p * D:(p + 1) * D] = xpad_ref[:, t:t + L, :].reshape(TB * L, D)

    # Two MXU matmuls; the tap accumulation happens inside the MXU f32 accumulator.
    ya = jnp.dot(x2_ref[:, :NA * D], wa_ref[...],
                 preferred_element_type=jnp.float32)              # (TB*L, 2*Cq) {k3,k5}
    yb = jnp.dot(x2_ref[...], wb_ref[...],
                 preferred_element_type=jnp.float32)              # (TB*L, 2*Cq) {k7,k9}
    y = jnp.concatenate([ya, yb], axis=-1) + b_ref[...]           # (TB*L, C), f32

    # Single full-width (lane-dense) stores for both outputs.
    y3 = y.reshape(TB, L, C)
    words_ref[...] = y3.astype(words_ref.dtype)
    # Note: max includes padded word positions (bias-only rows), matching torch.
    question_ref[...] = jnp.max(y3, axis=1, keepdims=True).astype(question_ref.dtype)


def cnn_question_module(x, weights, biases, *, compute_dtype=jnp.bfloat16,
                        m_target=512):
    """x: (B, L, D); weights[i]: (k_i, D, Cq); biases[i]: (1, Cq).

    Default compute_dtype=bfloat16 is the native full-rate MXU path on v5e/v6e/v7x and
    halves DMA/VMEM; accumulation stays f32.  Pass compute_dtype=jnp.float32 for a
    bit-tight comparison against the f32 reference.
    """
    B, L, D = x.shape
    Cq = weights[0].shape[-1]
    C = Cq * len(KSIZES)
    out_dtype = x.dtype

    wa, wb, b_fused = _fuse_weights(weights, biases)
    wa = wa.astype(compute_dtype)
    wb = wb.astype(compute_dtype)
    x_c = x.astype(compute_dtype)          # pre-cast: halves the HBM->VMEM input DMA

    in_bpe = jnp.dtype(compute_dtype).itemsize
    out_bpe = jnp.dtype(out_dtype).itemsize
    TB = _pick_tb(B, L, D, C, in_bpe, out_bpe, m_target=m_target)
    steps = pl.cdiv(B, TB)
    Bp = steps * TB
    if Bp != B:
        # Non-divisor batch: zero-pad the batch; padded rows are sliced off below.
        x_c = jnp.pad(x_c, ((0, Bp - B), (0, 0), (0, 0)))

    Lp = _round_up(L + 2 * MAXPAD, 8)      # padded word axis, sublane aligned

    kernel = functools.partial(_cnn_question_kernel, TB=TB, L=L, Lp=Lp,
                               compute_dtype=compute_dtype)

    in_specs = [
        pl.BlockSpec((TB, L, D), lambda b: (b, 0, 0)),             # x tile
        pl.BlockSpec((NA * D, 2 * Cq), lambda b: (0, 0)),          # fused weights A (resident)
        pl.BlockSpec((KMAX * D, 2 * Cq), lambda b: (0, 0)),        # fused weights B (resident)
        pl.BlockSpec((1, C), lambda b: (0, 0)),                    # fused bias (f32)
    ]
    out_shapes = (jax.ShapeDtypeStruct((Bp, L, C), out_dtype),
                  jax.ShapeDtypeStruct((Bp, 1, C), out_dtype))
    out_specs = (pl.BlockSpec((TB, L, C), lambda b: (b, 0, 0)),
                 pl.BlockSpec((TB, 1, C), lambda b: (b, 0, 0)))

    words, question = pl.pallas_call(
        kernel,
        out_shape=out_shapes,
        grid=(steps,),
        in_specs=in_specs,
        out_specs=out_specs,
        scratch_shapes=[
            pltpu.VMEM((TB, Lp, D), compute_dtype),                # zero-padded words
            pltpu.VMEM((TB * L, KMAX * D), compute_dtype),         # im2col buffer
        ],
        compiler_params=pltpu.CompilerParams(
            dimension_semantics=("parallel",),
            vmem_limit_bytes=48 * 1024 * 1024,   # safe on v7x (64 MiB/TC); ample headroom
        ),                                       # on v5e/v6e (128 MiB)
    )(x_c, wa, wb, b_fused)
    return words[:B], question[:B].reshape(B, C)


def reference(x, weights, biases):
    """Pure-JAX f32 reference of the same math (for correctness check)."""
    B, L, D = x.shape
    xpad = jnp.pad(x, ((0, 0), (MAXPAD, MAXPAD), (0, 0)))
    words_list, pooled_list = [], []
    for i, k in enumerate(KSIZES):
        off = MAXPAD - k // 2
        Cq = weights[i].shape[-1]
        acc = jnp.zeros((B, L, Cq), jnp.float32)
        for dk in range(k):
            acc = acc + jnp.einsum('bld,dc->blc',
                                   xpad[:, off + dk:off + dk + L, :], weights[i][dk])
        acc = acc + biases[i][None]
        words_list.append(acc)
        pooled_list.append(jnp.max(acc, axis=1))
    return jnp.concatenate(words_list, -1), jnp.concatenate(pooled_list, -1)


if __name__ == "__main__":
    # Small shapes consistent with the module; D and out_channels chosen as multiples
    # of 128 so inputs/outputs are lane-dense (real defaults are D=300, C=512, L~40).
    B, L, D = 4, 8, 128
    out_channels = 128
    Cq = out_channels // 4

    key = jax.random.PRNGKey(0)
    keys = jax.random.split(key, 1 + 2 * len(KSIZES))
    x = jax.random.normal(keys[0], (B, L, D), jnp.float32)

    # Deterministic parameter init mimicking PyTorch Conv2d default (U(-1/sqrt(fan_in), +)).
    weights, biases = [], []
    for i, k in enumerate(KSIZES):
        fan_in = 1 * k * D
        bound = 1.0 / (fan_in ** 0.5)
        w = jax.random.uniform(keys[1 + 2 * i], (k, D, Cq), jnp.float32, -bound, bound)
        b = jax.random.uniform(keys[2 + 2 * i], (1, Cq), jnp.float32, -bound, bound)
        weights.append(w)
        biases.append(b)

    ref_words, ref_question = reference(x, weights, biases)

    # Default bf16 compute path (f32 accumulation) -- bf16-appropriate tolerances.
    words, question = cnn_question_module(x, weights, biases)
    jax.block_until_ready((words, question))
    assert words.shape == (B, L, out_channels)
    assert question.shape == (B, out_channels)
    assert jnp.allclose(words, ref_words, atol=5e-2, rtol=5e-2), "words (bf16) mismatch"
    assert jnp.allclose(question, ref_question, atol=5e-2, rtol=5e-2), "question (bf16) mismatch"

    # Full-precision path: bit-tight check of the kernel structure itself.
    words32, question32 = cnn_question_module(x, weights, biases,
                                              compute_dtype=jnp.float32)
    jax.block_until_ready((words32, question32))
    assert jnp.allclose(words32, ref_words, atol=1e-3, rtol=1e-3), "words (f32) mismatch"
    assert jnp.allclose(question32, ref_question, atol=1e-3, rtol=1e-3), "question (f32) mismatch"

    print("KERNEL_OK")
</pallas_src>

<mosaic_0001>
module attributes {stable_mosaic.version = 11 : i64} {
  func.func @_cnn_question_kernel(%arg0: i32, %arg1: memref<4x8x128xbf16, #tpu.memory_space<vmem>>, %arg2: memref<640x64xbf16, #tpu.memory_space<vmem>>, %arg3: memref<1152x64xbf16, #tpu.memory_space<vmem>>, %arg4: memref<1x128xf32, #tpu.memory_space<vmem>>, %arg5: memref<4x8x128xf32, #tpu.memory_space<vmem>>, %arg6: memref<4x1x128xf32, #tpu.memory_space<vmem>>, %arg7: memref<4x16x128xbf16, #tpu.memory_space<vmem>>, %arg8: memref<32x1152xbf16, #tpu.memory_space<vmem>>) attributes {dimension_semantics = [#tpu.dimension_semantics<parallel>], iteration_bounds = array<i64: 1>, scalar_prefetch = 0 : i64, scratch_operands = 2 : i64, tpu.core_type = #tpu.core_type<tc>, window_params = [{transform_indices = @transform_0, window_bounds = array<i64: 4, 8, 128>}, {pipeline_mode = #tpu.pipeline_mode<synchronous>, transform_indices = @transform_1, window_bounds = array<i64: 640, 64>}, {pipeline_mode = #tpu.pipeline_mode<synchronous>, transform_indices = @transform_2, window_bounds = array<i64: 1152, 64>}, {pipeline_mode = #tpu.pipeline_mode<synchronous>, transform_indices = @transform_3, window_bounds = array<i64: 1, 128>}, {transform_indices = @transform_4, window_bounds = array<i64: 4, 8, 128>}, {transform_indices = @transform_5, window_bounds = array<i64: 4, 1, 128>}]} {
    %cst = arith.constant 0.000000e+00 : bf16
    %0 = vector.broadcast %cst : bf16 to vector<4x4x128xbf16>
    %c0 = arith.constant 0 : index
    %c0_0 = arith.constant 0 : index
    %c0_1 = arith.constant 0 : index
    %1 = vector.load %arg7[%c0, %c0_0, %c0_1] : memref<4x16x128xbf16, #tpu.memory_space<vmem>>, vector<4x4x128xbf16>
    tpu.vector_store %arg7[%c0, %c0_0, %c0_1], %0 {strides = array<i32>} : memref<4x16x128xbf16, #tpu.memory_space<vmem>>, vector<4x4x128xbf16>,
    %cst_2 = arith.constant 0.000000e+00 : bf16
    %2 = vector.broadcast %cst_2 : bf16 to vector<4x4x128xbf16>
    %c0_3 = arith.constant 0 : index
    %c12 = arith.constant 12 : index
    %c0_4 = arith.constant 0 : index
    %3 = vector.load %arg7[%c0_3, %c12, %c0_4] : memref<4x16x128xbf16, #tpu.memory_space<vmem>>, vector<4x4x128xbf16>
    tpu.vector_store %arg7[%c0_3, %c12, %c0_4], %2 {strides = array<i32>} : memref<4x16x128xbf16, #tpu.memory_space<vmem>>, vector<4x4x128xbf16>,
    %c0_5 = arith.constant 0 : index
    %c0_6 = arith.constant 0 : index
    %c0_7 = arith.constant 0 : index
    %4 = vector.load %arg1[%c0_5, %c0_6, %c0_7] : memref<4x8x128xbf16, #tpu.memory_space<vmem>>, vector<4x8x128xbf16>
    %c0_8 = arith.constant 0 : index
    %c4 = arith.constant 4 : index
    %c0_9 = arith.constant 0 : index
    %5 = vector.load %arg7[%c0_8, %c4, %c0_9] : memref<4x16x128xbf16, #tpu.memory_space<vmem>>, vector<4x8x128xbf16>
    tpu.vector_store %arg7[%c0_8, %c4, %c0_9], %4 {strides = array<i32>} : memref<4x16x128xbf16, #tpu.memory_space<vmem>>, vector<4x8x128xbf16>,
    %c0_10 = arith.constant 0 : index
    %c2 = arith.constant 2 : index
    %c0_11 = arith.constant 0 : index
    %6 = vector.load %arg7[%c0_10, %c2, %c0_11] : memref<4x16x128xbf16, #tpu.memory_space<vmem>>, vector<4x8x128xbf16>
    %7 = vector.shape_cast %6 : vector<4x8x128xbf16> to vector<32x128xbf16>
    %c0_12 = arith.constant 0 : index
    %c0_13 = arith.constant 0 : index
    %8 = vector.load %arg8[%c0_12, %c0_13] : memref<32x1152xbf16, #tpu.memory_space<vmem>>, vector<32x128xbf16>
    tpu.vector_store %arg8[%c0_12, %c0_13], %7 {strides = array<i32>} : memref<32x1152xbf16, #tpu.memory_space<vmem>>, vector<32x128xbf16>,
    %c0_14 = arith.constant 0 : index
    %c3 = arith.constant 3 : index
    %c0_15 = arith.constant 0 : index
    %9 = vector.load %arg7[%c0_14, %c3, %c0_15] : memref<4x16x128xbf16, #tpu.memory_space<vmem>>, vector<4x8x128xbf16>
    %10 = vector.shape_cast %9 : vector<4x8x128xbf16> to vector<32x128xbf16>
    %c0_16 = arith.constant 0 : index
    %c128 = arith.constant 128 : index
    %11 = vector.load %arg8[%c0_16, %c128] : memref<32x1152xbf16, #tpu.memory_space<vmem>>, vector<32x128xbf16>
    tpu.vector_store %arg8[%c0_16, %c128], %10 {strides = array<i32>} : memref<32x1152xbf16, #tpu.memory_space<vmem>>, vector<32x128xbf16>,
    %c0_17 = arith.constant 0 : index
    %c4_18 = arith.constant 4 : index
    %c0_19 = arith.constant 0 : index
    %12 = vector.load %arg7[%c0_17, %c4_18, %c0_19] : memref<4x16x128xbf16, #tpu.memory_space<vmem>>, vector<4x8x128xbf16>
    %13 = vector.shape_cast %12 : vector<4x8x128xbf16> to vector<32x128xbf16>
    %c0_20 = arith.constant 0 : index
    %c256 = arith.constant 256 : index
    %14 = vector.load %arg8[%c0_20, %c256] : memref<32x1152xbf16, #tpu.memory_space<vmem>>, vector<32x128xbf16>
    tpu.vector_store %arg8[%c0_20, %c256], %13 {strides = array<i32>} : memref<32x1152xbf16, #tpu.memory_space<vmem>>, vector<32x128xbf16>,
    %c0_21 = arith.constant 0 : index
    %c5 = arith.constant 5 : index
    %c0_22 = arith.constant 0 : index
    %15 = vector.load %arg7[%c0_21, %c5, %c0_22] : memref<4x16x128xbf16, #tpu.memory_space<vmem>>, vector<4x8x128xbf16>
    %16 = vector.shape_cast %15 : vector<4x8x128xbf16> to vector<32x128xbf16>
    %c0_23 = arith.constant 0 : index
    %c384 = arith.constant 384 : index
    %17 = vector.load %arg8[%c0_23, %c384] : memref<32x1152xbf16, #tpu.memory_space<vmem>>, vector<32x128xbf16>
    tpu.vector_store %arg8[%c0_23, %c384], %16 {strides = array<i32>} : memref<32x1152xbf16, #tpu.memory_space<vmem>>, vector<32x128xbf16>,
    %c0_24 = arith.constant 0 : index
    %c6 = arith.constant 6 : index
    %c0_25 = arith.constant 0 : index
    %18 = vector.load %arg7[%c0_24, %c6, %c0_25] : memref<4x16x128xbf16, #tpu.memory_space<vmem>>, vector<4x8x128xbf16>
    %19 = vector.shape_cast %18 : vector<4x8x128xbf16> to vector<32x128xbf16>
    %c0_26 = arith.constant 0 : index
    %c512 = arith.constant 512 : index
    %20 = vector.load %arg8[%c0_26, %c512] : memref<32x1152xbf16, #tpu.memory_space<vmem>>, vector<32x128xbf16>
    tpu.vector_store %arg8[%c0_26, %c512], %19 {strides = array<i32>} : memref<32x1152xbf16, #tpu.memory_space<vmem>>, vector<32x128xbf16>,
    %c0_27 = arith.constant 0 : index
    %c0_28 = arith.constant 0 : index
    %c0_29 = arith.constant 0 : index
    %21 = vector.load %arg7[%c0_27, %c0_28, %c0_29] : memref<4x16x128xbf16, #tpu.memory_space<vmem>>, vector<4x8x128xbf16>
    %22 = vector.shape_cast %21 : vector<4x8x128xbf16> to vector<32x128xbf16>
    %c0_30 = arith.constant 0 : index
    %c640 = arith.constant 640 : index
    %23 = vector.load %arg8[%c0_30, %c640] : memref<32x1152xbf16, #tpu.memory_space<vmem>>, vector<32x128xbf16>
    tpu.vector_store %arg8[%c0_30, %c640], %22 {strides = array<i32>} : memref<32x1152xbf16, #tpu.memory_space<vmem>>, vector<32x128xbf16>,
    %c0_31 = arith.constant 0 : index
    %c1 = arith.constant 1 : index
    %c0_32 = arith.constant 0 : index
    %24 = vector.load %arg7[%c0_31, %c1, %c0_32] : memref<4x16x128xbf16, #tpu.memory_space<vmem>>, vector<4x8x128xbf16>
    %25 = vector.shape_cast %24 : vector<4x8x128xbf16> to vector<32x128xbf16>
    %c0_33 = arith.constant 0 : index
    %c768 = arith.constant 768 : index
    %26 = vector.load %arg8[%c0_33, %c768] : memref<32x1152xbf16, #tpu.memory_space<vmem>>, vector<32x128xbf16>
    tpu.vector_store %arg8[%c0_33, %c768], %25 {strides = array<i32>} : memref<32x1152xbf16, #tpu.memory_space<vmem>>, vector<32x128xbf16>,
    %c0_34 = arith.constant 0 : index
    %c7 = arith.constant 7 : index
    %c0_35 = arith.constant 0 : index
    %27 = vector.load %arg7[%c0_34, %c7, %c0_35] : memref<4x16x128xbf16, #tpu.memory_space<vmem>>, vector<4x8x128xbf16>
    %28 = vector.shape_cast %27 : vector<4x8x128xbf16> to vector<32x128xbf16>
    %c0_36 = arith.constant 0 : index
    %c896 = arith.constant 896 : index
    %29 = vector.load %arg8[%c0_36, %c896] : memref<32x1152xbf16, #tpu.memory_space<vmem>>, vector<32x128xbf16>
    tpu.vector_store %arg8[%c0_36, %c896], %28 {strides = array<i32>} : memref<32x1152xbf16, #tpu.memory_space<vmem>>, vector<32x128xbf16>,
    %c0_37 = arith.constant 0 : index
    %c8 = arith.constant 8 : index
    %c0_38 = arith.constant 0 : index
    %30 = vector.load %arg7[%c0_37, %c8, %c0_38] : memref<4x16x128xbf16, #tpu.memory_space<vmem>>, vector<4x8x128xbf16>
    %31 = vector.shape_cast %30 : vector<4x8x128xbf16> to vector<32x128xbf16>
    %c0_39 = arith.constant 0 : index
    %c1024 = arith.constant 1024 : index
    %32 = vector.load %arg8[%c0_39, %c1024] : memref<32x1152xbf16, #tpu.memory_space<vmem>>, vector<32x128xbf16>
    tpu.vector_store %arg8[%c0_39, %c1024], %31 {strides = array<i32>} : memref<32x1152xbf16, #tpu.memory_space<vmem>>, vector<32x128xbf16>,
    %c0_40 = arith.constant 0 : index
    %c0_41 = arith.constant 0 : index
    %33 = vector.load %arg8[%c0_40, %c0_41] : memref<32x1152xbf16, #tpu.memory_space<vmem>>, vector<32x640xbf16>
    %c0_42 = arith.constant 0 : index
    %c0_43 = arith.constant 0 : index
    %34 = vector.load %arg2[%c0_42, %c0_43] : memref<640x64xbf16, #tpu.memory_space<vmem>>, vector<640x64xbf16>
    %cst_44 = arith.constant dense<0.000000e+00> : vector<32x64xf32>
    %35 = tpu.matmul %33, %34, %cst_44 {dimension_numbers = #tpu.dot_dimension_numbers<[1], [0], [0], [1], [0, 0, 1, 1], [], []>} : vector<32x640xbf16>, vector<640x64xbf16>, vector<32x64xf32> -> vector<32x64xf32>
    %c0_45 = arith.constant 0 : index
    %c0_46 = arith.constant 0 : index
    %36 = vector.load %arg8[%c0_45, %c0_46] : memref<32x1152xbf16, #tpu.memory_space<vmem>>, vector<32x1152xbf16>
    %c0_47 = arith.constant 0 : index
    %c0_48 = arith.constant 0 : index
    %37 = vector.load %arg3[%c0_47, %c0_48] : memref<1152x64xbf16, #tpu.memory_space<vmem>>, vector<1152x64xbf16>
    %cst_49 = arith.constant dense<0.000000e+00> : vector<32x64xf32>
    %38 = tpu.matmul %36, %37, %cst_49 {dimension_numbers = #tpu.dot_dimension_numbers<[1], [0], [0], [1], [0, 0, 1, 1], [], []>} : vector<32x1152xbf16>, vector<1152x64xbf16>, vector<32x64xf32> -> vector<32x64xf32>
    %39 = tpu.concatenate %35, %38 in 1 : vector<32x64xf32>, vector<32x64xf32> -> vector<32x128xf32>
    %c0_50 = arith.constant 0 : index
    %c0_51 = arith.constant 0 : index
    %40 = vector.load %arg4[%c0_50, %c0_51] : memref<1x128xf32, #tpu.memory_space<vmem>>, vector<1x128xf32>
    %41 = vector.broadcast %40 : vector<1x128xf32> to vector<32x128xf32>
    %42 = arith.addf %39, %41 : vector<32x128xf32>
    %43 = vector.shape_cast %42 : vector<32x128xf32> to vector<4x8x128xf32>
    %c0_52 = arith.constant 0 : index
    %c0_53 = arith.constant 0 : index
    %c0_54 = arith.constant 0 : index
    %44 = vector.load %arg5[%c0_52, %c0_53, %c0_54] : memref<4x8x128xf32, #tpu.memory_space<vmem>>, vector<4x8x128xf32>
    tpu.vector_store %arg5[%c0_52, %c0_53, %c0_54], %43 {strides = array<i32>} : memref<4x8x128xf32, #tpu.memory_space<vmem>>, vector<4x8x128xf32>,
    %cst_55 = arith.constant dense<0xFF800000> : vector<4x128xf32>
    %45 = vector.multi_reduction <maximumf>, %43, %cst_55 [1] : vector<4x8x128xf32> to vector<4x128xf32>
    %46 = vector.shape_cast %45 : vector<4x128xf32> to vector<4x1x128xf32>
    %c0_56 = arith.constant 0 : index
    %c0_57 = arith.constant 0 : index
    %c0_58 = arith.constant 0 : index
    %47 = vector.load %arg6[%c0_56, %c0_57, %c0_58] : memref<4x1x128xf32, #tpu.memory_space<vmem>>, vector<4x1x128xf32>
    tpu.vector_store %arg6[%c0_56, %c0_57, %c0_58], %46 {strides = array<i32>} : memref<4x1x128xf32, #tpu.memory_space<vmem>>, vector<4x1x128xf32>,
    return
  }
  func.func @transform_0(%arg0: i32) -> (i32, i32, i32) {
    %c0_i32 = arith.constant 0 : i32
    %c0_i32_0 = arith.constant 0 : i32
    %c0_i32_1 = arith.constant 0 : i32
    return %arg0, %c0_i32, %c0_i32_0 : i32, i32, i32
  }
  func.func @transform_1(%arg0: i32) -> (i32, i32) {
    %c0_i32 = arith.constant 0 : i32
    %c0_i32_0 = arith.constant 0 : i32
    %c0_i32_1 = arith.constant 0 : i32
    return %c0_i32, %c0_i32_0 : i32, i32
  }
  func.func @transform_2(%arg0: i32) -> (i32, i32) {
    %c0_i32 = arith.constant 0 : i32
    %c0_i32_0 = arith.constant 0 : i32
    %c0_i32_1 = arith.constant 0 : i32
    return %c0_i32, %c0_i32_0 : i32, i32
  }
  func.func @transform_3(%arg0: i32) -> (i32, i32) {
    %c0_i32 = arith.constant 0 : i32
    %c0_i32_0 = arith.constant 0 : i32
    %c0_i32_1 = arith.constant 0 : i32
    return %c0_i32, %c0_i32_0 : i32, i32
  }
  func.func @transform_4(%arg0: i32) -> (i32, i32, i32) {
    %c0_i32 = arith.constant 0 : i32
    %c0_i32_0 = arith.constant 0 : i32
    %c0_i32_1 = arith.constant 0 : i32
    return %arg0, %c0_i32, %c0_i32_0 : i32, i32, i32
  }
  func.func @transform_5(%arg0: i32) -> (i32, i32, i32) {
    %c0_i32 = arith.constant 0 : i32
    %c0_i32_0 = arith.constant 0 : i32
    %c0_i32_1 = arith.constant 0 : i32
    return %arg0, %c0_i32, %c0_i32_0 : i32, i32, i32
  }
}

</mosaic_0001>

<llo_original>
// kernel: tpu_custom_call.1
$region0: #{tpu_custom_call.1}
  #allocation0 [shape = 'u32[]', space=smem, size = 0x4, offset = 0x4, fixed_abs, tag = 'smem constant byte address 0x4 - core index']
  #allocation1 [shape = 'u32[144,128]{1,0:T(1,128)}', space=vmem, size = 0x12000, scoped, tag = 'internal scratch']
  #allocation2 [shape = 'bf16[4,16,128]{2,1,0:T(16,128)(2,1)}', space=vmem, size = 0x4000, scoped, tag = 'scratch operand']
  #allocation3 [shape = 'bf16[32,1152]{1,0:T(16,128)(2,1)}', space=vmem, size = 0x12000, scoped, tag = 'scratch operand']
  %s0 = inlined_call_operand.vmem [shape: bf16[4,8,128], index: 0, kind: input, shape index: {}]
  %s1 = inlined_call_operand.vmem [shape: bf16[640,64], index: 1, kind: input, shape index: {}]
  %s2 = inlined_call_operand.vmem [shape: bf16[1152,64], index: 2, kind: input, shape index: {}]
  %s3 = inlined_call_operand.vmem [shape: f32[1,128], index: 3, kind: input, shape index: {}]
  %s4 = inlined_call_operand.hbm [shape: f32[4,8,128], index: 4, kind: output, shape index: {0}]
  %s5 = inlined_call_operand.hbm [shape: f32[4,1,128], index: 5, kind: output, shape index: {1}]
  %6 = xla_tuple %s4, %s5
  %s7 = sld [smem:[#allocation0]]
  $region34: #{tpu_custom_call.1} parent=0
    _
  %s9 = ssub.s32 1, %s7
  %s10 = scalar_select 0, %s9, %s7
  $region1: #{tpu_custom_call.1} parent=0
    #allocation4 [shape = 'u8[16384]{0}', space=vmem, size = 0x4000, scoped, tag = 'output window, operand 0, single buffered']
    #allocation5 [shape = 's32[1]{0}', space=sflag, size = 0x4, scoped, tag = 'scoped memory for tpu_custom_call.1']
    #allocation6 [shape = 'u8[2048]{0}', space=vmem, size = 0x800, scoped, tag = 'output window, operand 1, single buffered']
    #allocation7 [shape = 's32[1]{0}', space=sflag, size = 0x4, scoped, tag = 'scoped memory for tpu_custom_call.1']
    %11 = vsyncpa [#allocation5], 0
    %12 = vsyncpa [#allocation7], 0
    // Predicated region
    $region2: #{tpu_custom_call.1} parent=1 // pred_check
      _
    $region3: #{tpu_custom_call.1} parent=1 // pred_check_branch
      %14 = sbr.rel (0) target = $region5
    $region4: #{tpu_custom_call.1} parent=1 // pred_region
      _
    $region5: #{tpu_custom_call.1} parent=1 // pred_fallthru
      _
    // Predicated region
    $region6: #{tpu_custom_call.1} parent=1 // pred_check
      _
    $region7: #{tpu_custom_call.1} parent=1 // pred_check_branch
      %16 = sbr.rel (0) target = $region9
    $region8: #{tpu_custom_call.1} parent=1 // pred_region
      _
    $region9: #{tpu_custom_call.1} parent=1 // pred_fallthru
      _
    // Predicated region
    $region10: #{tpu_custom_call.1} parent=1 // pred_check
      _
    $region11: #{tpu_custom_call.1} parent=1 // pred_check_branch
      %18 = sbr.rel (0) target = $region13
    $region12: #{tpu_custom_call.1} parent=1 // pred_region
      _
    $region13: #{tpu_custom_call.1} parent=1 // pred_fallthru
      _
    // Predicated region
    $region14: #{tpu_custom_call.1} parent=1 // pred_check
      _
    $region15: #{tpu_custom_call.1} parent=1 // pred_check_branch
      %20 = sbr.rel (0) target = $region17
    $region16: #{tpu_custom_call.1} parent=1 // pred_region
      _
    $region17: #{tpu_custom_call.1} parent=1 // pred_fallthru
      _
    %22 = vst [vmem:[#allocation2] sm:$0x3] 0
    %23 = vst [vmem:[#allocation2 + $0x8] sm:$0x3] 0
    %24 = vst [vmem:[#allocation2 + $0x10] sm:$0x3] 0
    %25 = vst [vmem:[#allocation2 + $0x18] sm:$0x3] 0
    %26 = vst [vmem:[#allocation2] sm:$0xc0] 0
    %27 = vst [vmem:[#allocation2 + $0x8] sm:$0xc0] 0
    %28 = vst [vmem:[#allocation2 + $0x10] sm:$0xc0] 0
    %29 = vst [vmem:[#allocation2 + $0x18] sm:$0xc0] 0
    %v30 = vld [vmem:[%s0] sm:$0xf]
    %v31 = vld [vmem:[%s0 + $0x4] sm:$0xf]
    %v32 = vld [vmem:[%s0 + $0x8] sm:$0xf]
    %v33 = vld [vmem:[%s0 + $0xc] sm:$0xf]
    %v38 = vunpack.c.l.b16 %v30
    %v39 = vunpack.c.l.b16 %v31
    %v40 = vunpack.c.l.b16 %v32
    %v41 = vunpack.c.l.b16 %v33
    %v42 = vpack.c.b16 %v38, %v38
    %v43 = vpack.c.b16 %v39, %v39
    %v44 = vpack.c.b16 %v40, %v40
    %v45 = vpack.c.b16 %v41, %v41
    %v46 = vrot.slane %v42, 6
    %v47 = vrot.slane %v43, 6
    %v48 = vrot.slane %v44, 6
    %v49 = vrot.slane %v45, 6
    %54 = vst [vmem:[#allocation2] sm:$0x3c] %v46
    %55 = vst [vmem:[#allocation2 + $0x8] sm:$0x3c] %v47
    %56 = vst [vmem:[#allocation2 + $0x10] sm:$0x3c] %v48
    %57 = vst [vmem:[#allocation2 + $0x18] sm:$0x3c] %v49
    %v58 = vld [vmem:[#allocation2] sm:$0x1e]
    %v59 = vld [vmem:[#allocation2 + $0x8] sm:$0x1e]
    %v60 = vld [vmem:[#allocation2 + $0x10] sm:$0x1e]
    %v61 = vld [vmem:[#allocation2 + $0x18] sm:$0x1e]
    %v66 = vunpack.c.l.b16 %v58
    %v67 = vunpack.c.h.b16 %v58
    %v68 = vunpack.c.l.b16 %v59
    %v69 = vunpack.c.h.b16 %v59
    %v70 = vunpack.c.l.b16 %v60
    %v71 = vunpack.c.h.b16 %v60
    %v72 = vunpack.c.l.b16 %v61
    %v73 = vunpack.c.h.b16 %v61
    %v74 = vpack.c.b16 %v66, %v66
    %v75 = vpack.c.b16 %v67, %v67
    %v76 = vpack.c.b16 %v68, %v68
    %v77 = vpack.c.b16 %v69, %v69
    %v78 = vpack.c.b16 %v70, %v70
    %v79 = vpack.c.b16 %v71, %v71
    %v80 = vpack.c.b16 %v72, %v72
    %v81 = vpack.c.b16 %v73, %v73
    %vm82 = vcmask 1042432
    %vm83 = vcmask 1046532
    %vm84 = vmor %vm82, %vm83
    %v85 = vrot.slane %v74, 5
    %v86 = vrot.slane %v85, 4
    %v87 = vrot.slane %v75, 5
    %v88 = vsel %vm84, %v86, %v87
    %v89 = vrot.slane %v76, 5
    %v90 = vrot.slane %v89, 4
    %v91 = vrot.slane %v77, 5
    %v92 = vsel %vm84, %v90, %v91
    %v93 = vrot.slane %v78, 5
    %v94 = vrot.slane %v93, 4
    %v95 = vrot.slane %v79, 5
    %v96 = vsel %vm84, %v94, %v95
    %v97 = vrot.slane %v80, 5
    %v98 = vrot.slane %v97, 4
    %v99 = vrot.slane %v81, 5
    %v100 = vsel %vm84, %v98, %v99
    %v101 = vunpack.c.l.b16 %v88
    %v102 = vunpack.c.l.b16 %v92
    %v103 = vunpack.c.l.b16 %v96
    %v104 = vunpack.c.l.b16 %v100
    %v105 = vpack.c.b16 %v102, %v101
    %v106 = vpack.c.b16 %v104, %v103
    %109 = vst [vmem:[#allocation3] sm:$0xff] %v105
    %110 = vst [vmem:[#allocation3 + $0x48] sm:$0xff] %v106
    %v111 = vld [vmem:[#allocation2] sm:$0x3e]
    %v112 = vld [vmem:[#allocation2 + $0x8] sm:$0x3e]
    %v113 = vld [vmem:[#allocation2 + $0x10] sm:$0x3e]
    %v114 = vld [vmem:[#allocation2 + $0x18] sm:$0x3e]
    %v119 = vunpack.c.l.b16 %v111
    %v120 = vunpack.c.h.b16 %v111
    %v121 = vunpack.c.l.b16 %v112
    %v122 = vunpack.c.h.b16 %v112
    %v123 = vunpack.c.l.b16 %v113
    %v124 = vunpack.c.h.b16 %v113
    %v125 = vunpack.c.l.b16 %v114
    %v126 = vunpack.c.h.b16 %v114
    %v127 = vpack.c.b16 %v119, %v119
    %v128 = vpack.c.b16 %v120, %v120
    %v129 = vpack.c.b16 %v121, %v121
    %v130 = vpack.c.b16 %v122, %v122
    %v131 = vpack.c.b16 %v123, %v123
    %v132 = vpack.c.b16 %v124, %v124
    %v133 = vpack.c.b16 %v125, %v125
    %v134 = vpack.c.b16 %v126, %v126
    %vm135 = vsmask.f32 2304
    %vm136 = vsmask.f32 6416
    %vm137 = vmor %vm135, %vm136
    %v139 = vshrl.u32 %v127, 16
    %v141 = vrot.slane %v139, 5
    %v142 = vshll.u32 %v127, 16
    %v144 = vrot.slane %v142, 6
    %v145 = vor.u32 %v141, %v144
    %v146 = vrot.slane %v145, 4
    %v148 = vshrl.u32 %v128, 16
    %v150 = vrot.slane %v148, 5
    %v151 = vshll.u32 %v128, 16
    %v153 = vrot.slane %v151, 6
    %v154 = vor.u32 %v150, %v153
    %v155 = vsel %vm137, %v146, %v154
    %v157 = vshrl.u32 %v129, 16
    %v159 = vrot.slane %v157, 5
    %v160 = vshll.u32 %v129, 16
    %v162 = vrot.slane %v160, 6
    %v163 = vor.u32 %v159, %v162
    %v164 = vrot.slane %v163, 4
    %v166 = vshrl.u32 %v130, 16
    %v168 = vrot.slane %v166, 5
    %v169 = vshll.u32 %v130, 16
    %v171 = vrot.slane %v169, 6
    %v172 = vor.u32 %v168, %v171
    %v173 = vsel %vm137, %v164, %v172
    %v175 = vshrl.u32 %v131, 16
    %v177 = vrot.slane %v175, 5
    %v178 = vshll.u32 %v131, 16
    %v180 = vrot.slane %v178, 6
    %v181 = vor.u32 %v177, %v180
    %v182 = vrot.slane %v181, 4
    %v184 = vshrl.u32 %v132, 16
    %v186 = vrot.slane %v184, 5
    %v187 = vshll.u32 %v132, 16
    %v189 = vrot.slane %v187, 6
    %v190 = vor.u32 %v186, %v189
    %v191 = vsel %vm137, %v182, %v190
    %v193 = vshrl.u32 %v133, 16
    %v195 = vrot.slane %v193, 5
    %v196 = vshll.u32 %v133, 16
    %v198 = vrot.slane %v196, 6
    %v199 = vor.u32 %v195, %v198
    %v200 = vrot.slane %v199, 4
    %v202 = vshrl.u32 %v134, 16
    %v204 = vrot.slane %v202, 5
    %v205 = vshll.u32 %v134, 16
    %v207 = vrot.slane %v205, 6
    %v208 = vor.u32 %v204, %v207
    %v209 = vsel %vm137, %v200, %v208
    %v210 = vunpack.c.l.b16 %v155
    %v211 = vunpack.c.l.b16 %v173
    %v212 = vunpack.c.l.b16 %v191
    %v213 = vunpack.c.l.b16 %v209
    %v214 = vpack.c.b16 %v211, %v210
    %v215 = vpack.c.b16 %v213, %v212
    %218 = vst [vmem:[#allocation3 + $0x8] sm:$0xff] %v214
    %219 = vst [vmem:[#allocation3 + $0x50] sm:$0xff] %v215
    %v220 = vld [vmem:[#allocation2] sm:$0x3c]
    %v221 = vld [vmem:[#allocation2 + $0x8] sm:$0x3c]
    %v222 = vld [vmem:[#allocation2 + $0x10] sm:$0x3c]
    %v223 = vld [vmem:[#allocation2 + $0x18] sm:$0x3c]
    %v228 = vunpack.c.l.b16 %v220
    %v229 = vunpack.c.h.b16 %v220
    %v230 = vunpack.c.l.b16 %v221
    %v231 = vunpack.c.h.b16 %v221
    %v232 = vunpack.c.l.b16 %v222
    %v233 = vunpack.c.h.b16 %v222
    %v234 = vunpack.c.l.b16 %v223
    %v235 = vunpack.c.h.b16 %v223
    %v236 = vpack.c.b16 %v228, %v228
    %v237 = vpack.c.b16 %v229, %v229
    %v238 = vpack.c.b16 %v230, %v230
    %v239 = vpack.c.b16 %v231, %v231
    %v240 = vpack.c.b16 %v232, %v232
    %v241 = vpack.c.b16 %v233, %v233
    %v242 = vpack.c.b16 %v234, %v234
    %v243 = vpack.c.b16 %v235, %v235
    %vm244 = vcmask 1041408
    %vm245 = vcmask 1045508
    %vm246 = vmor %vm244, %vm245
    %v247 = vrot.slane %v236, 6
    %v248 = vrot.slane %v247, 4
    %v249 = vrot.slane %v237, 6
    %v250 = vsel %vm246, %v248, %v249
    %v251 = vrot.slane %v238, 6
    %v252 = vrot.slane %v251, 4
    %v253 = vrot.slane %v239, 6
    %v254 = vsel %vm246, %v252, %v253
    %v255 = vrot.slane %v240, 6
    %v256 = vrot.slane %v255, 4
    %v257 = vrot.slane %v241, 6
    %v258 = vsel %vm246, %v256, %v257
    %v259 = vrot.slane %v242, 6
    %v260 = vrot.slane %v259, 4
    %v261 = vrot.slane %v243, 6
    %v262 = vsel %vm246, %v260, %v261
    %v263 = vunpack.c.l.b16 %v250
    %v264 = vunpack.c.l.b16 %v254
    %v265 = vunpack.c.l.b16 %v258
    %v266 = vunpack.c.l.b16 %v262
    %v267 = vpack.c.b16 %v264, %v263
    %v268 = vpack.c.b16 %v266, %v265
    %271 = vst [vmem:[#allocation3 + $0x10] sm:$0xff] %v267
    %272 = vst [vmem:[#allocation3 + $0x58] sm:$0xff] %v268
    %v273 = vld [vmem:[#allocation2] sm:$0x7c]
    %v274 = vld [vmem:[#allocation2 + $0x8] sm:$0x7c]
    %v275 = vld [vmem:[#allocation2 + $0x10] sm:$0x7c]
    %v276 = vld [vmem:[#allocation2 + $0x18] sm:$0x7c]
    %v281 = vunpack.c.l.b16 %v273
    %v282 = vunpack.c.h.b16 %v273
    %v283 = vunpack.c.l.b16 %v274
    %v284 = vunpack.c.h.b16 %v274
    %v285 = vunpack.c.l.b16 %v275
    %v286 = vunpack.c.h.b16 %v275
    %v287 = vunpack.c.l.b16 %v276
    %v288 = vunpack.c.h.b16 %v276
    %v289 = vpack.c.b16 %v281, %v281
    %v290 = vpack.c.b16 %v282, %v282
    %v291 = vpack.c.b16 %v283, %v283
    %v292 = vpack.c.b16 %v284, %v284
    %v293 = vpack.c.b16 %v285, %v285
    %v294 = vpack.c.b16 %v286, %v286
    %v295 = vpack.c.b16 %v287, %v287
    %v296 = vpack.c.b16 %v288, %v288
    %vm297 = vsmask.f32 1280
    %vm298 = vsmask.f32 5392
    %vm299 = vmor %vm297, %vm298
    %v301 = vshrl.u32 %v289, 16
    %v303 = vrot.slane %v301, 6
    %v304 = vshll.u32 %v289, 16
    %v306 = vrot.slane %v304, 7
    %v307 = vor.u32 %v303, %v306
    %v308 = vrot.slane %v307, 4
    %v310 = vshrl.u32 %v290, 16
    %v312 = vrot.slane %v310, 6
    %v313 = vshll.u32 %v290, 16
    %v315 = vrot.slane %v313, 7
    %v316 = vor.u32 %v312, %v315
    %v317 = vsel %vm299, %v308, %v316
    %v319 = vshrl.u32 %v291, 16
    %v321 = vrot.slane %v319, 6
    %v322 = vshll.u32 %v291, 16
    %v324 = vrot.slane %v322, 7
    %v325 = vor.u32 %v321, %v324
    %v326 = vrot.slane %v325, 4
    %v328 = vshrl.u32 %v292, 16
    %v330 = vrot.slane %v328, 6
    %v331 = vshll.u32 %v292, 16
    %v333 = vrot.slane %v331, 7
    %v334 = vor.u32 %v330, %v333
    %v335 = vsel %vm299, %v326, %v334
    %v337 = vshrl.u32 %v293, 16
    %v339 = vrot.slane %v337, 6
    %v340 = vshll.u32 %v293, 16
    %v342 = vrot.slane %v340, 7
    %v343 = vor.u32 %v339, %v342
    %v344 = vrot.slane %v343, 4
    %v346 = vshrl.u32 %v294, 16
    %v348 = vrot.slane %v346, 6
    %v349 = vshll.u32 %v294, 16
    %v351 = vrot.slane %v349, 7
    %v352 = vor.u32 %v348, %v351
    %v353 = vsel %vm299, %v344, %v352
    %v355 = vshrl.u32 %v295, 16
    %v357 = vrot.slane %v355, 6
    %v358 = vshll.u32 %v295, 16
    %v360 = vrot.slane %v358, 7
    %v361 = vor.u32 %v357, %v360
    %v362 = vrot.slane %v361, 4
    %v364 = vshrl.u32 %v296, 16
    %v366 = vrot.slane %v364, 6
    %v367 = vshll.u32 %v296, 16
    %v369 = vrot.slane %v367, 7
    %v370 = vor.u32 %v366, %v369
    %v371 = vsel %vm299, %v362, %v370
    %v372 = vunpack.c.l.b16 %v317
    %v373 = vunpack.c.l.b16 %v335
    %v374 = vunpack.c.l.b16 %v353
    %v375 = vunpack.c.l.b16 %v371
    %v376 = vpack.c.b16 %v373, %v372
    %v377 = vpack.c.b16 %v375, %v374
    %380 = vst [vmem:[#allocation3 + $0x18] sm:$0xff] %v376
    %381 = vst [vmem:[#allocation3 + $0x60] sm:$0xff] %v377
    %v382 = vld [vmem:[#allocation2] sm:$0x78]
    %v383 = vld [vmem:[#allocation2 + $0x8] sm:$0x78]
    %v384 = vld [vmem:[#allocation2 + $0x10] sm:$0x78]
    %v385 = vld [vmem:[#allocation2 + $0x18] sm:$0x78]
    %v390 = vunpack.c.l.b16 %v382
    %v391 = vunpack.c.h.b16 %v382
    %v392 = vunpack.c.l.b16 %v383
    %v393 = vunpack.c.h.b16 %v383
    %v394 = vunpack.c.l.b16 %v384
    %v395 = vunpack.c.h.b16 %v384
    %v396 = vunpack.c.l.b16 %v385
    %v397 = vunpack.c.h.b16 %v385
    %v398 = vpack.c.b16 %v390, %v390
    %v399 = vpack.c.b16 %v391, %v391
    %v400 = vpack.c.b16 %v392, %v392
    %v401 = vpack.c.b16 %v393, %v393
    %v402 = vpack.c.b16 %v394, %v394
    %v403 = vpack.c.b16 %v395, %v395
    %v404 = vpack.c.b16 %v396, %v396
    %v405 = vpack.c.b16 %v397, %v397
    %vm406 = vcmask 1040384
    %vm407 = vcmask 1044484
    %vm408 = vmor %vm406, %vm407
    %v409 = vrot.slane %v398, 7
    %v410 = vrot.slane %v409, 4
    %v411 = vrot.slane %v399, 7
    %v412 = vsel %vm408, %v410, %v411
    %v413 = vrot.slane %v400, 7
    %v414 = vrot.slane %v413, 4
    %v415 = vrot.slane %v401, 7
    %v416 = vsel %vm408, %v414, %v415
    %v417 = vrot.slane %v402, 7
    %v418 = vrot.slane %v417, 4
    %v419 = vrot.slane %v403, 7
    %v420 = vsel %vm408, %v418, %v419
    %v421 = vrot.slane %v404, 7
    %v422 = vrot.slane %v421, 4
    %v423 = vrot.slane %v405, 7
    %v424 = vsel %vm408, %v422, %v423
    %v425 = vunpack.c.l.b16 %v412
    %v426 = vunpack.c.l.b16 %v416
    %v427 = vunpack.c.l.b16 %v420
    %v428 = vunpack.c.l.b16 %v424
    %v429 = vpack.c.b16 %v426, %v425
    %v430 = vpack.c.b16 %v428, %v427
    %433 = vst [vmem:[#allocation3 + $0x20] sm:$0xff] %v429
    %434 = vst [vmem:[#allocation3 + $0x68] sm:$0xff] %v430
    %v435 = vld [vmem:[#allocation2] sm:$0xf]
    %v436 = vld [vmem:[#allocation2 + $0x8] sm:$0xf]
    %v437 = vld [vmem:[#allocation2 + $0x10] sm:$0xf]
    %v438 = vld [vmem:[#allocation2 + $0x18] sm:$0xf]
    %v443 = vunpack.c.l.b16 %v435
    %v444 = vunpack.c.l.b16 %v436
    %v445 = vunpack.c.l.b16 %v437
    %v446 = vunpack.c.l.b16 %v438
    %v447 = vpack.c.b16 %v444, %v443
    %v448 = vpack.c.b16 %v446, %v445
    %451 = vst [vmem:[#allocation3 + $0x28] sm:$0xff] %v447
    %452 = vst [vmem:[#allocation3 + $0x70] sm:$0xff] %v448
    %v453 = vld [vmem:[#allocation2] sm:$0x1f]
    %v454 = vld [vmem:[#allocation2 + $0x8] sm:$0x1f]
    %v455 = vld [vmem:[#allocation2 + $0x10] sm:$0x1f]
    %v456 = vld [vmem:[#allocation2 + $0x18] sm:$0x1f]
    %v461 = vunpack.c.l.b16 %v453
    %v462 = vunpack.c.h.b16 %v453
    %v463 = vunpack.c.l.b16 %v454
    %v464 = vunpack.c.h.b16 %v454
    %v465 = vunpack.c.l.b16 %v455
    %v466 = vunpack.c.h.b16 %v455
    %v467 = vunpack.c.l.b16 %v456
    %v468 = vunpack.c.h.b16 %v456
    %v469 = vpack.c.b16 %v461, %v461
    %v470 = vpack.c.b16 %v462, %v462
    %v471 = vpack.c.b16 %v463, %v463
    %v472 = vpack.c.b16 %v464, %v464
    %v473 = vpack.c.b16 %v465, %v465
    %v474 = vpack.c.b16 %v466, %v466
    %v475 = vpack.c.b16 %v467, %v467
    %v476 = vpack.c.b16 %v468, %v468
    %vm477 = vsmask.f32 3328
    %vm478 = vsmask.f32 7440
    %vm479 = vmor %vm477, %vm478
    %v481 = vshrl.u32 %v469, 16
    %v483 = vrot.slane %v481, 4
    %v484 = vshll.u32 %v469, 16
    %v486 = vrot.slane %v484, 5
    %v487 = vor.u32 %v483, %v486
    %v488 = vrot.slane %v487, 4
    %v490 = vshll.u32 %v470, 16
    %v492 = vrot.slane %v490, 5
    %v493 = vsel %vm479, %v488, %v492
    %v495 = vshrl.u32 %v471, 16
    %v497 = vrot.slane %v495, 4
    %v498 = vshll.u32 %v471, 16
    %v500 = vrot.slane %v498, 5
    %v501 = vor.u32 %v497, %v500
    %v502 = vrot.slane %v501, 4
    %v504 = vshll.u32 %v472, 16
    %v506 = vrot.slane %v504, 5
    %v507 = vsel %vm479, %v502, %v506
    %v509 = vshrl.u32 %v473, 16
    %v511 = vrot.slane %v509, 4
    %v512 = vshll.u32 %v473, 16
    %v514 = vrot.slane %v512, 5
    %v515 = vor.u32 %v511, %v514
    %v516 = vrot.slane %v515, 4
    %v518 = vshll.u32 %v474, 16
    %v520 = vrot.slane %v518, 5
    %v521 = vsel %vm479, %v516, %v520
    %v523 = vshrl.u32 %v475, 16
    %v525 = vrot.slane %v523, 4
    %v526 = vshll.u32 %v475, 16
    %v528 = vrot.slane %v526, 5
    %v529 = vor.u32 %v525, %v528
    %v530 = vrot.slane %v529, 4
    %v532 = vshll.u32 %v476, 16
    %v534 = vrot.slane %v532, 5
    %v535 = vsel %vm479, %v530, %v534
    %v536 = vunpack.c.l.b16 %v493
    %v537 = vunpack.c.l.b16 %v507
    %v538 = vunpack.c.l.b16 %v521
    %v539 = vunpack.c.l.b16 %v535
    %v540 = vpack.c.b16 %v537, %v536
    %v541 = vpack.c.b16 %v539, %v538
    %544 = vst [vmem:[#allocation3 + $0x30] sm:$0xff] %v540
    %545 = vst [vmem:[#allocation3 + $0x78] sm:$0xff] %v541
    %v546 = vld [vmem:[#allocation2] sm:$0xf8]
    %v547 = vld [vmem:[#allocation2 + $0x8] sm:$0xf8]
    %v548 = vld [vmem:[#allocation2 + $0x10] sm:$0xf8]
    %v549 = vld [vmem:[#allocation2 + $0x18] sm:$0xf8]
    %v554 = vunpack.c.l.b16 %v546
    %v555 = vunpack.c.h.b16 %v546
    %v556 = vunpack.c.l.b16 %v547
    %v557 = vunpack.c.h.b16 %v547
    %v558 = vunpack.c.l.b16 %v548
    %v559 = vunpack.c.h.b16 %v548
    %v560 = vunpack.c.l.b16 %v549
    %v561 = vunpack.c.h.b16 %v549
    %v562 = vpack.c.b16 %v554, %v554
    %v563 = vpack.c.b16 %v555, %v555
    %v564 = vpack.c.b16 %v556, %v556
    %v565 = vpack.c.b16 %v557, %v557
    %v566 = vpack.c.b16 %v558, %v558
    %v567 = vpack.c.b16 %v559, %v559
    %v568 = vpack.c.b16 %v560, %v560
    %v569 = vpack.c.b16 %v561, %v561
    %vm570 = vsmask.f32 256
    %vm571 = vsmask.f32 4368
    %vm572 = vmor %vm570, %vm571
    %v574 = vshrl.u32 %v562, 16
    %v576 = vrot.slane %v574, 7
    %v577 = vrot.slane %v576, 4
    %v579 = vshrl.u32 %v563, 16
    %v581 = vrot.slane %v579, 7
    %v582 = vshll.u32 %v563, 16
    %v584 = vor.u32 %v581, %v582
    %v585 = vsel %vm572, %v577, %v584
    %v587 = vshrl.u32 %v564, 16
    %v589 = vrot.slane %v587, 7
    %v590 = vrot.slane %v589, 4
    %v592 = vshrl.u32 %v565, 16
    %v594 = vrot.slane %v592, 7
    %v595 = vshll.u32 %v565, 16
    %v597 = vor.u32 %v594, %v595
    %v598 = vsel %vm572, %v590, %v597
    %v600 = vshrl.u32 %v566, 16
    %v602 = vrot.slane %v600, 7
    %v603 = vrot.slane %v602, 4
    %v605 = vshrl.u32 %v567, 16
    %v607 = vrot.slane %v605, 7
    %v608 = vshll.u32 %v567, 16
    %v610 = vor.u32 %v607, %v608
    %v611 = vsel %vm572, %v603, %v610
    %v613 = vshrl.u32 %v568, 16
    %v615 = vrot.slane %v613, 7
    %v616 = vrot.slane %v615, 4
    %v618 = vshrl.u32 %v569, 16
    %v620 = vrot.slane %v618, 7
    %v621 = vshll.u32 %v569, 16
    %v623 = vor.u32 %v620, %v621
    %v624 = vsel %vm572, %v616, %v623
    %v625 = vunpack.c.l.b16 %v585
    %v626 = vunpack.c.l.b16 %v598
    %v627 = vunpack.c.l.b16 %v611
    %v628 = vunpack.c.l.b16 %v624
    %v629 = vpack.c.b16 %v626, %v625
    %v630 = vpack.c.b16 %v628, %v627
    %633 = vst [vmem:[#allocation3 + $0x38] sm:$0xff] %v629
    %634 = vst [vmem:[#allocation3 + $0x80] sm:$0xff] %v630
    %v635 = vld [vmem:[#allocation2] sm:$0xf0]
    %v636 = vld [vmem:[#allocation2 + $0x8] sm:$0xf0]
    %v637 = vld [vmem:[#allocation2 + $0x10] sm:$0xf0]
    %v638 = vld [vmem:[#allocation2 + $0x18] sm:$0xf0]
    %v643 = vunpack.c.h.b16 %v635
    %v644 = vunpack.c.h.b16 %v636
    %v645 = vunpack.c.h.b16 %v637
    %v646 = vunpack.c.h.b16 %v638
    %v647 = vpack.c.b16 %v644, %v643
    %v648 = vpack.c.b16 %v646, %v645
    %651 = vst [vmem:[#allocation3 + $0x40] sm:$0xff] %v647
    %652 = vst [vmem:[#allocation3 + $0x88] sm:$0xff] %v648
    %v653 = vld [vmem:[#allocation3] sm:$0xff]
    %v654 = vld [vmem:[#allocation3 + $0x8] sm:$0xff]
    %v655 = vld [vmem:[#allocation3 + $0x10] sm:$0xff]
    %v656 = vld [vmem:[#allocation3 + $0x18] sm:$0xff]
    %v657 = vld [vmem:[#allocation3 + $0x20] sm:$0xff]
    %v658 = vld [vmem:[#allocation3 + $0x48] sm:$0xff]
    %v659 = vld [vmem:[#allocation3 + $0x50] sm:$0xff]
    %v660 = vld [vmem:[#allocation3 + $0x58] sm:$0xff]
    %v661 = vld [vmem:[#allocation3 + $0x60] sm:$0xff]
    %v662 = vld [vmem:[#allocation3 + $0x68] sm:$0xff]
    %v663 = vld [vmem:[%s1] sm:$0xf]
    %v664 = vld [vmem:[%s1 + $0x4] sm:$0xf]
    %v665 = vld [vmem:[%s1 + $0x8] sm:$0xf]
    %v666 = vld [vmem:[%s1 + $0xc] sm:$0xf]
    %v667 = vld [vmem:[%s1 + $0x10] sm:$0xf]
    %v668 = vld [vmem:[%s1 + $0x14] sm:$0xf]
    %v669 = vld [vmem:[%s1 + $0x18] sm:$0xf]
    %v670 = vld [vmem:[%s1 + $0x1c] sm:$0xf]
    %v671 = vld [vmem:[%s1 + $0x20] sm:$0xf]
    %v672 = vld [vmem:[%s1 + $0x24] sm:$0xf]
    %v673 = vld [vmem:[%s1 + $0x28] sm:$0xf]
    %v674 = vld [vmem:[%s1 + $0x2c] sm:$0xf]
    %v675 = vld [vmem:[%s1 + $0x30] sm:$0xf]
    %v676 = vld [vmem:[%s1 + $0x34] sm:$0xf]
    %v677 = vld [vmem:[%s1 + $0x38] sm:$0xf]
    %v678 = vld [vmem:[%s1 + $0x3c] sm:$0xf]
    %v679 = vld [vmem:[%s1 + $0x40] sm:$0xf]
    %v680 = vld [vmem:[%s1 + $0x44] sm:$0xf]
    %v681 = vld [vmem:[%s1 + $0x48] sm:$0xf]
    %v682 = vld [vmem:[%s1 + $0x4c] sm:$0xf]
    %v683 = vld [vmem:[%s1 + $0x50] sm:$0xf]
    %v684 = vld [vmem:[%s1 + $0x54] sm:$0xf]
    %v685 = vld [vmem:[%s1 + $0x58] sm:$0xf]
    %v686 = vld [vmem:[%s1 + $0x5c] sm:$0xf]
    %v687 = vld [vmem:[%s1 + $0x60] sm:$0xf]
    %v688 = vld [vmem:[%s1 + $0x64] sm:$0xf]
    %v689 = vld [vmem:[%s1 + $0x68] sm:$0xf]
    %v690 = vld [vmem:[%s1 + $0x6c] sm:$0xf]
    %v691 = vld [vmem:[%s1 + $0x70] sm:$0xf]
    %v692 = vld [vmem:[%s1 + $0x74] sm:$0xf]
    %v693 = vld [vmem:[%s1 + $0x78] sm:$0xf]
    %v694 = vld [vmem:[%s1 + $0x7c] sm:$0xf]
    %v695 = vld [vmem:[%s1 + $0x80] sm:$0xf]
    %v696 = vld [vmem:[%s1 + $0x84] sm:$0xf]
    %v697 = vld [vmem:[%s1 + $0x88] sm:$0xf]
    %v698 = vld [vmem:[%s1 + $0x8c] sm:$0xf]
    %v699 = vld [vmem:[%s1 + $0x90] sm:$0xf]
    %v700 = vld [vmem:[%s1 + $0x94] sm:$0xf]
    %v701 = vld [vmem:[%s1 + $0x98] sm:$0xf]
    %v702 = vld [vmem:[%s1 + $0x9c] sm:$0xf]
    %v703 = vld [vmem:[%s1 + $0xa0] sm:$0xf]
    %v704 = vld [vmem:[%s1 + $0xa4] sm:$0xf]
    %v705 = vld [vmem:[%s1 + $0xa8] sm:$0xf]
    %v706 = vld [vmem:[%s1 + $0xac] sm:$0xf]
    %v707 = vld [vmem:[%s1 + $0xb0] sm:$0xf]
    %v708 = vld [vmem:[%s1 + $0xb4] sm:$0xf]
    %v709 = vld [vmem:[%s1 + $0xb8] sm:$0xf]
    %v710 = vld [vmem:[%s1 + $0xbc] sm:$0xf]
    %v711 = vld [vmem:[%s1 + $0xc0] sm:$0xf]
    %v712 = vld [vmem:[%s1 + $0xc4] sm:$0xf]
    %v713 = vld [vmem:[%s1 + $0xc8] sm:$0xf]
    %v714 = vld [vmem:[%s1 + $0xcc] sm:$0xf]
    %v715 = vld [vmem:[%s1 + $0xd0] sm:$0xf]
    %v716 = vld [vmem:[%s1 + $0xd4] sm:$0xf]
    %v717 = vld [vmem:[%s1 + $0xd8] sm:$0xf]
    %v718 = vld [vmem:[%s1 + $0xdc] sm:$0xf]
    %v719 = vld [vmem:[%s1 + $0xe0] sm:$0xf]
    %v720 = vld [vmem:[%s1 + $0xe4] sm:$0xf]
    %v721 = vld [vmem:[%s1 + $0xe8] sm:$0xf]
    %v722 = vld [vmem:[%s1 + $0xec] sm:$0xf]
    %v723 = vld [vmem:[%s1 + $0xf0] sm:$0xf]
    %v724 = vld [vmem:[%s1 + $0xf4] sm:$0xf]
    %v725 = vld [vmem:[%s1 + $0xf8] sm:$0xf]
    %v726 = vld [vmem:[%s1 + $0xfc] sm:$0xf]
    %v727 = vld [vmem:[%s1 + $0x100] sm:$0xf]
    %v728 = vld [vmem:[%s1 + $0x104] sm:$0xf]
    %v729 = vld [vmem:[%s1 + $0x108] sm:$0xf]
    %v730 = vld [vmem:[%s1 + $0x10c] sm:$0xf]
    %v731 = vld [vmem:[%s1 + $0x110] sm:$0xf]
    %v732 = vld [vmem:[%s1 + $0x114] sm:$0xf]
    %v733 = vld [vmem:[%s1 + $0x118] sm:$0xf]
    %v734 = vld [vmem:[%s1 + $0x11c] sm:$0xf]
    %v735 = vld [vmem:[%s1 + $0x120] sm:$0xf]
    %v736 = vld [vmem:[%s1 + $0x124] sm:$0xf]
    %v737 = vld [vmem:[%s1 + $0x128] sm:$0xf]
    %v738 = vld [vmem:[%s1 + $0x12c] sm:$0xf]
    %v739 = vld [vmem:[%s1 + $0x130] sm:$0xf]
    %v740 = vld [vmem:[%s1 + $0x134] sm:$0xf]
    %v741 = vld [vmem:[%s1 + $0x138] sm:$0xf]
    %v742 = vld [vmem:[%s1 + $0x13c] sm:$0xf]
    %v823 = vunpack.c.l.b16 %v663
    %v824 = vunpack.c.l.b16 %v664
    %v825 = vunpack.c.l.b16 %v665
    %v826 = vunpack.c.l.b16 %v666
    %v827 = vunpack.c.l.b16 %v667
    %v828 = vunpack.c.l.b16 %v668
    %v829 = vunpack.c.l.b16 %v669
    %v830 = vunpack.c.l.b16 %v670
    %v831 = vunpack.c.l.b16 %v671
    %v832 = vunpack.c.l.b16 %v672
    %v833 = vunpack.c.l.b16 %v673
    %v834 = vunpack.c.l.b16 %v674
    %v835 = vunpack.c.l.b16 %v675
    %v836 = vunpack.c.l.b16 %v676
    %v837 = vunpack.c.l.b16 %v677
    %v838 = vunpack.c.l.b16 %v678
    %v839 = vunpack.c.l.b16 %v679
    %v840 = vunpack.c.l.b16 %v680
    %v841 = vunpack.c.l.b16 %v681
    %v842 = vunpack.c.l.b16 %v682
    %v843 = vunpack.c.l.b16 %v683
    %v844 = vunpack.c.l.b16 %v684
    %v845 = vunpack.c.l.b16 %v685
    %v846 = vunpack.c.l.b16 %v686
    %v847 = vunpack.c.l.b16 %v687
    %v848 = vunpack.c.l.b16 %v688
    %v849 = vunpack.c.l.b16 %v689
    %v850 = vunpack.c.l.b16 %v690
    %v851 = vunpack.c.l.b16 %v691
    %v852 = vunpack.c.l.b16 %v692
    %v853 = vunpack.c.l.b16 %v693
    %v854 = vunpack.c.l.b16 %v694
    %v855 = vunpack.c.l.b16 %v695
    %v856 = vunpack.c.l.b16 %v696
    %v857 = vunpack.c.l.b16 %v697
    %v858 = vunpack.c.l.b16 %v698
    %v859 = vunpack.c.l.b16 %v699
    %v860 = vunpack.c.l.b16 %v700
    %v861 = vunpack.c.l.b16 %v701
    %v862 = vunpack.c.l.b16 %v702
    %v863 = vunpack.c.l.b16 %v703
    %v864 = vunpack.c.l.b16 %v704
    %v865 = vunpack.c.l.b16 %v705
    %v866 = vunpack.c.l.b16 %v706
    %v867 = vunpack.c.l.b16 %v707
    %v868 = vunpack.c.l.b16 %v708
    %v869 = vunpack.c.l.b16 %v709
    %v870 = vunpack.c.l.b16 %v710
    %v871 = vunpack.c.l.b16 %v711
    %v872 = vunpack.c.l.b16 %v712
    %v873 = vunpack.c.l.b16 %v713
    %v874 = vunpack.c.l.b16 %v714
    %v875 = vunpack.c.l.b16 %v715
    %v876 = vunpack.c.l.b16 %v716
    %v877 = vunpack.c.l.b16 %v717
    %v878 = vunpack.c.l.b16 %v718
    %v879 = vunpack.c.l.b16 %v719
    %v880 = vunpack.c.l.b16 %v720
    %v881 = vunpack.c.l.b16 %v721
    %v882 = vunpack.c.l.b16 %v722
    %v883 = vunpack.c.l.b16 %v723
    %v884 = vunpack.c.l.b16 %v724
    %v885 = vunpack.c.l.b16 %v725
    %v886 = vunpack.c.l.b16 %v726
    %v887 = vunpack.c.l.b16 %v727
    %v888 = vunpack.c.l.b16 %v728
    %v889 = vunpack.c.l.b16 %v729
    %v890 = vunpack.c.l.b16 %v730
    %v891 = vunpack.c.l.b16 %v731
    %v892 = vunpack.c.l.b16 %v732
    %v893 = vunpack.c.l.b16 %v733
    %v894 = vunpack.c.l.b16 %v734
    %v895 = vunpack.c.l.b16 %v735
    %v896 = vunpack.c.l.b16 %v736
    %v897 = vunpack.c.l.b16 %v737
    %v898 = vunpack.c.l.b16 %v738
    %v899 = vunpack.c.l.b16 %v739
    %v900 = vunpack.c.l.b16 %v740
    %v901 = vunpack.c.l.b16 %v741
    %v902 = vunpack.c.l.b16 %v742
    %v903 = vpack.c.b16 %v824, %v823
    %v904 = vpack.c.b16 %v826, %v825
    %v905 = vpack.c.b16 %v828, %v827
    %v906 = vpack.c.b16 %v830, %v829
    %v907 = vpack.c.b16 %v832, %v831
    %v908 = vpack.c.b16 %v834, %v833
    %v909 = vpack.c.b16 %v836, %v835
    %v910 = vpack.c.b16 %v838, %v837
    %v911 = vpack.c.b16 %v840, %v839
    %v912 = vpack.c.b16 %v842, %v841
    %v913 = vpack.c.b16 %v844, %v843
    %v914 = vpack.c.b16 %v846, %v845
    %v915 = vpack.c.b16 %v848, %v847
    %v916 = vpack.c.b16 %v850, %v849
    %v917 = vpack.c.b16 %v852, %v851
    %v918 = vpack.c.b16 %v854, %v853
    %v919 = vpack.c.b16 %v856, %v855
    %v920 = vpack.c.b16 %v858, %v857
    %v921 = vpack.c.b16 %v860, %v859
    %v922 = vpack.c.b16 %v862, %v861
    %v923 = vpack.c.b16 %v864, %v863
    %v924 = vpack.c.b16 %v866, %v865
    %v925 = vpack.c.b16 %v868, %v867
    %v926 = vpack.c.b16 %v870, %v869
    %v927 = vpack.c.b16 %v872, %v871
    %v928 = vpack.c.b16 %v874, %v873
    %v929 = vpack.c.b16 %v876, %v875
    %v930 = vpack.c.b16 %v878, %v877
    %v931 = vpack.c.b16 %v880, %v879
    %v932 = vpack.c.b16 %v882, %v881
    %v933 = vpack.c.b16 %v884, %v883
    %v934 = vpack.c.b16 %v886, %v885
    %v935 = vpack.c.b16 %v888, %v887
    %v936 = vpack.c.b16 %v890, %v889
    %v937 = vpack.c.b16 %v892, %v891
    %v938 = vpack.c.b16 %v894, %v893
    %v939 = vpack.c.b16 %v896, %v895
    %v940 = vpack.c.b16 %v898, %v897
    %v941 = vpack.c.b16 %v900, %v899
    %v942 = vpack.c.b16 %v902, %v901
    %983 = vmatprep.subr.bf16.mxu0 0
    %984 = vmatpush1.bf16.msra.mxu0 %v903
    %985 = vmatprep.subr.bf16.mxu0 0
    %986 = vmatpush1.bf16.msra.mxu0 %v904
    %987 = vmatprep.subr.bf16.mxu0 0
    %988 = vmatpush1.bf16.msra.mxu0 %v905
    %989 = vmatprep.subr.bf16.mxu0 0
    %990 = vmatpush1.bf16.msra.mxu0 %v906
    %991 = vmatprep.subr.bf16.mxu0 0
    %992 = vmatpush1.bf16.msra.mxu0 %v907
    %993 = vmatprep.subr.bf16.mxu0 0
    %994 = vmatpush1.bf16.msra.mxu0 %v908
    %995 = vmatprep.subr.bf16.mxu0 0
    %996 = vmatpush1.bf16.msra.mxu0 %v909
    %997 = vmatprep.subr.bf16.mxu0 0
    %998 = vmatpush1.bf16.msra.mxu0 %v910
    %999 = vmatprep.subr.bf16.mxu0 0
    %1000 = vmatpush1.bf16.msra.mxu0 %v911
    %1001 = vmatprep.subr.bf16.mxu0 0
    %1002 = vmatpush1.bf16.msra.mxu0 %v912
    %1003 = vmatprep.subr.bf16.mxu0 0
    %1004 = vmatpush1.bf16.msra.mxu0 %v913
    %1005 = vmatprep.subr.bf16.mxu0 0
    %1006 = vmatpush1.bf16.msra.mxu0 %v914
    %1007 = vmatprep.subr.bf16.mxu0 0
    %1008 = vmatpush1.bf16.msra.mxu0 %v915
    %1009 = vmatprep.subr.bf16.mxu0 0
    %1010 = vmatpush1.bf16.msra.mxu0 %v916
    %1011 = vmatprep.subr.bf16.mxu0 0
    %1012 = vmatpush1.bf16.msra.mxu0 %v917
    %1013 = vmatprep.subr.bf16.mxu0 0
    %1014 = vmatpush1.bf16.msra.mxu0 %v918
    %1015 = vmatprep.mubr.bf16.mxu0 %v654
    %1016 = vmatmul.mubr.bf16.gmra.mrb[0].mxu0 %v653
    %v1017 = vpop.f32.mrb[0].mxu0
    %v1018 = vadd.f32 0.0, %v1017
    %v1019 = vpop.f32.mrb[0].mxu0
    %v1020 = vpop.f32.mrb[0].mxu0
    %v1021 = vadd.f32 0.0, %v1020
    %v1022 = vpop.f32.mrb[0].mxu0
    %1023 = vmatprep.mubr.bf16.mxu0 %v659
    %1024 = vmatmul.mubr.bf16.gmra.mrb[0].mxu0 %v658
    %v1025 = vpop.f32.mrb[0].mxu0
    %v1026 = vadd.f32 0.0, %v1025
    %v1027 = vpop.f32.mrb[0].mxu0
    %v1028 = vpop.f32.mrb[0].mxu0
    %v1029 = vadd.f32 0.0, %v1028
    %v1030 = vpop.f32.mrb[0].mxu0
    %1031 = vdwg.mxu0
    %1032 = vmatprep.subr.bf16.mxu0 0
    %1033 = vmatpush1.bf16.msra.mxu0 %v919
    %1034 = vmatprep.subr.bf16.mxu0 0
    %1035 = vmatpush1.bf16.msra.mxu0 %v920
    %1036 = vmatprep.subr.bf16.mxu0 0
    %1037 = vmatpush1.bf16.msra.mxu0 %v921
    %1038 = vmatprep.subr.bf16.mxu0 0
    %1039 = vmatpush1.bf16.msra.mxu0 %v922
    %1040 = vmatprep.subr.bf16.mxu0 0
    %1041 = vmatpush1.bf16.msra.mxu0 %v923
    %1042 = vmatprep.subr.bf16.mxu0 0
    %1043 = vmatpush1.bf16.msra.mxu0 %v924
    %1044 = vmatprep.subr.bf16.mxu0 0
    %1045 = vmatpush1.bf16.msra.mxu0 %v925
    %1046 = vmatprep.subr.bf16.mxu0 0
    %1047 = vmatpush1.bf16.msra.mxu0 %v926
    %1048 = vmatprep.subr.bf16.mxu0 0
    %1049 = vmatpush1.bf16.msra.mxu0 %v927
    %1050 = vmatprep.subr.bf16.mxu0 0
    %1051 = vmatpush1.bf16.msra.mxu0 %v928
    %1052 = vmatprep.subr.bf16.mxu0 0
    %1053 = vmatpush1.bf16.msra.mxu0 %v929
    %1054 = vmatprep.subr.bf16.mxu0 0
    %1055 = vmatpush1.bf16.msra.mxu0 %v930
    %1056 = vmatprep.subr.bf16.mxu0 0
    %1057 = vmatpush1.bf16.msra.mxu0 %v931
    %1058 = vmatprep.subr.bf16.mxu0 0
    %1059 = vmatpush1.bf16.msra.mxu0 %v932
    %1060 = vmatprep.subr.bf16.mxu0 0
    %1061 = vmatpush1.bf16.msra.mxu0 %v933
    %1062 = vmatprep.subr.bf16.mxu0 0
    %1063 = vmatpush1.bf16.msra.mxu0 %v934
    %1064 = vmatprep.mubr.bf16.mxu0 %v656
    %1065 = vmatmul.mubr.bf16.gmra.mrb[0].mxu0 %v655
    %v1066 = vpop.f32.mrb[0].mxu0
    %v1067 = vadd.f32 %v1018, %v1066
    %v1068 = vpop.f32.mrb[0].mxu0
    %v1069 = vpop.f32.mrb[0].mxu0
    %v1070 = vadd.f32 %v1021, %v1069
    %v1071 = vpop.f32.mrb[0].mxu0
    %1072 = vmatprep.mubr.bf16.mxu0 %v661
    %1073 = vmatmul.mubr.bf16.gmra.mrb[0].mxu0 %v660
    %v1074 = vpop.f32.mrb[0].mxu0
    %v1075 = vadd.f32 %v1026, %v1074
    %v1076 = vpop.f32.mrb[0].mxu0
    %v1077 = vpop.f32.mrb[0].mxu0
    %v1078 = vadd.f32 %v1029, %v1077
    %v1079 = vpop.f32.mrb[0].mxu0
    %1080 = vdwg.mxu0
    %1081 = vmatprep.subr.bf16.mxu0 0
    %1082 = vmatpush1.bf16.msra.mxu0 %v935
    %1083 = vmatprep.subr.bf16.mxu0 0
    %1084 = vmatpush1.bf16.msra.mxu0 %v936
    %1085 = vmatprep.subr.bf16.mxu0 0
    %1086 = vmatpush1.bf16.msra.mxu0 %v937
    %1087 = vmatprep.subr.bf16.mxu0 0
    %1088 = vmatpush1.bf16.msra.mxu0 %v938
    %1089 = vmatprep.subr.bf16.mxu0 0
    %1090 = vmatpush1.bf16.msra.mxu0 %v939
    %1091 = vmatprep.subr.bf16.mxu0 0
    %1092 = vmatpush1.bf16.msra.mxu0 %v940
    %1093 = vmatprep.subr.bf16.mxu0 0
    %1094 = vmatpush1.bf16.msra.mxu0 %v941
    %1095 = vmatprep.subr.bf16.mxu0 0
    %1096 = vmatpush1.bf16.msra.mxu0 %v942
    %1097 = vmatprep.subr.bf16.mxu0 0
    %1098 = vmatpush1.bf16.msra.mxu0 0
    %1099 = vmatprep.subr.bf16.mxu0 0
    %1100 = vmatpush1.bf16.msra.mxu0 0
    %1101 = vmatprep.subr.bf16.mxu0 0
    %1102 = vmatpush1.bf16.msra.mxu0 0
    %1103 = vmatprep.subr.bf16.mxu0 0
    %1104 = vmatpush1.bf16.msra.mxu0 0
    %1105 = vmatprep.subr.bf16.mxu0 0
    %1106 = vmatpush1.bf16.msra.mxu0 0
    %1107 = vmatprep.subr.bf16.mxu0 0
    %1108 = vmatpush1.bf16.msra.mxu0 0
    %1109 = vmatprep.subr.bf16.mxu0 0
    %1110 = vmatpush1.bf16.msra.mxu0 0
    %1111 = vmatprep.subr.bf16.mxu0 0
    %1112 = vmatpush1.bf16.msra.mxu0 0
    %1113 = vmatprep.mubr.bf16.mxu0 0
    %1114 = vmatmul.mubr.bf16.gmra.mrb[0].mxu0 %v657
    %v1115 = vpop.f32.mrb[0].mxu0
    %v1116 = vadd.f32 %v1067, %v1115
    %v1117 = vpop.f32.mrb[0].mxu0
    %v1118 = vpop.f32.mrb[0].mxu0
    %v1119 = vadd.f32 %v1070, %v1118
    %v1120 = vpop.f32.mrb[0].mxu0
    %1121 = vmatprep.mubr.bf16.mxu0 0
    %1122 = vmatmul.mubr.bf16.gmra.mrb[0].mxu0 %v662
    %v1123 = vpop.f32.mrb[0].mxu0
    %v1124 = vadd.f32 %v1075, %v1123
    %v1125 = vpop.f32.mrb[0].mxu0
    %v1126 = vpop.f32.mrb[0].mxu0
    %v1127 = vadd.f32 %v1078, %v1126
    %v1128 = vpop.f32.mrb[0].mxu0
    %1129 = vdwg.mxu0
    %v1130 = vld [vmem:[#allocation3] sm:$0xff]
    %v1131 = vld [vmem:[#allocation3 + $0x8] sm:$0xff]
    %v1132 = vld [vmem:[#allocation3 + $0x10] sm:$0xff]
    %v1133 = vld [vmem:[#allocation3 + $0x18] sm:$0xff]
    %v1134 = vld [vmem:[#allocation3 + $0x20] sm:$0xff]
    %v1135 = vld [vmem:[#allocation3 + $0x28] sm:$0xff]
    %v1136 = vld [vmem:[#allocation3 + $0x30] sm:$0xff]
    %v1137 = vld [vmem:[#allocation3 + $0x38] sm:$0xff]
    %v1138 = vld [vmem:[#allocation3 + $0x40] sm:$0xff]
    %v1139 = vld [vmem:[#allocation3 + $0x48] sm:$0xff]
    %v1140 = vld [vmem:[#allocation3 + $0x50] sm:$0xff]
    %v1141 = vld [vmem:[#allocation3 + $0x58] sm:$0xff]
    %v1142 = vld [vmem:[#allocation3 + $0x60] sm:$0xff]
    %v1143 = vld [vmem:[#allocation3 + $0x68] sm:$0xff]
    %v1144 = vld [vmem:[#allocation3 + $0x70] sm:$0xff]
    %v1145 = vld [vmem:[#allocation3 + $0x78] sm:$0xff]
    %v1146 = vld [vmem:[#allocation3 + $0x80] sm:$0xff]
    %v1147 = vld [vmem:[#allocation3 + $0x88] sm:$0xff]
    %v1148 = vld [vmem:[%s2] sm:$0xf]
    %v1149 = vld [vmem:[%s2 + $0x4] sm:$0xf]
    %v1150 = vld [vmem:[%s2 + $0x8] sm:$0xf]
    %v1151 = vld [vmem:[%s2 + $0xc] sm:$0xf]
    %v1152 = vld [vmem:[%s2 + $0x10] sm:$0xf]
    %v1153 = vld [vmem:[%s2 + $0x14] sm:$0xf]
    %v1154 = vld [vmem:[%s2 + $0x18] sm:$0xf]
    %v1155 = vld [vmem:[%s2 + $0x1c] sm:$0xf]
    %v1156 = vld [vmem:[%s2 + $0x20] sm:$0xf]
    %v1157 = vld [vmem:[%s2 + $0x24] sm:$0xf]
    %v1158 = vld [vmem:[%s2 + $0x28] sm:$0xf]
    %v1159 = vld [vmem:[%s2 + $0x2c] sm:$0xf]
    %v1160 = vld [vmem:[%s2 + $0x30] sm:$0xf]
    %v1161 = vld [vmem:[%s2 + $0x34] sm:$0xf]
    %v1162 = vld [vmem:[%s2 + $0x38] sm:$0xf]
    %v1163 = vld [vmem:[%s2 + $0x3c] sm:$0xf]
    %v1164 = vld [vmem:[%s2 + $0x40] sm:$0xf]
    %v1165 = vld [vmem:[%s2 + $0x44] sm:$0xf]
    %v1166 = vld [vmem:[%s2 + $0x48] sm:$0xf]
    %v1167 = vld [vmem:[%s2 + $0x4c] sm:$0xf]
    %v1168 = vld [vmem:[%s2 + $0x50] sm:$0xf]
    %v1169 = vld [vmem:[%s2 + $0x54] sm:$0xf]
    %v1170 = vld [vmem:[%s2 + $0x58] sm:$0xf]
    %v1171 = vld [vmem:[%s2 + $0x5c] sm:$0xf]
    %v1172 = vld [vmem:[%s2 + $0x60] sm:$0xf]
    %v1173 = vld [vmem:[%s2 + $0x64] sm:$0xf]
    %v1174 = vld [vmem:[%s2 + $0x68] sm:$0xf]
    %v1175 = vld [vmem:[%s2 + $0x6c] sm:$0xf]
    %v1176 = vld [vmem:[%s2 + $0x70] sm:$0xf]
    %v1177 = vld [vmem:[%s2 + $0x74] sm:$0xf]
    %v1178 = vld [vmem:[%s2 + $0x78] sm:$0xf]
    %v1179 = vld [vmem:[%s2 + $0x7c] sm:$0xf]
    %v1180 = vld [vmem:[%s2 + $0x80] sm:$0xf]
    %v1181 = vld [vmem:[%s2 + $0x84] sm:$0xf]
    %v1182 = vld [vmem:[%s2 + $0x88] sm:$0xf]
    %v1183 = vld [vmem:[%s2 + $0x8c] sm:$0xf]
    %v1184 = vld [vmem:[%s2 + $0x90] sm:$0xf]
    %v1185 = vld [vmem:[%s2 + $0x94] sm:$0xf]
    %v1186 = vld [vmem:[%s2 + $0x98] sm:$0xf]
    %v1187 = vld [vmem:[%s2 + $0x9c] sm:$0xf]
    %v1188 = vld [vmem:[%s2 + $0xa0] sm:$0xf]
    %v1189 = vld [vmem:[%s2 + $0xa4] sm:$0xf]
    %v1190 = vld [vmem:[%s2 + $0xa8] sm:$0xf]
    %v1191 = vld [vmem:[%s2 + $0xac] sm:$0xf]
    %v1192 = vld [vmem:[%s2 + $0xb0] sm:$0xf]
    %v1193 = vld [vmem:[%s2 + $0xb4] sm:$0xf]
    %v1194 = vld [vmem:[%s2 + $0xb8] sm:$0xf]
    %v1195 = vld [vmem:[%s2 + $0xbc] sm:$0xf]
    %v1196 = vld [vmem:[%s2 + $0xc0] sm:$0xf]
    %v1197 = vld [vmem:[%s2 + $0xc4] sm:$0xf]
    %v1198 = vld [vmem:[%s2 + $0xc8] sm:$0xf]
    %v1199 = vld [vmem:[%s2 + $0xcc] sm:$0xf]
    %v1200 = vld [vmem:[%s2 + $0xd0] sm:$0xf]
    %v1201 = vld [vmem:[%s2 + $0xd4] sm:$0xf]
    %v1202 = vld [vmem:[%s2 + $0xd8] sm:$0xf]
    %v1203 = vld [vmem:[%s2 + $0xdc] sm:$0xf]
    %v1204 = vld [vmem:[%s2 + $0xe0] sm:$0xf]
    %v1205 = vld [vmem:[%s2 + $0xe4] sm:$0xf]
    %v1206 = vld [vmem:[%s2 + $0xe8] sm:$0xf]
    %v1207 = vld [vmem:[%s2 + $0xec] sm:$0xf]
    %v1208 = vld [vmem:[%s2 + $0xf0] sm:$0xf]
    %v1209 = vld [vmem:[%s2 + $0xf4] sm:$0xf]
    %v1210 = vld [vmem:[%s2 + $0xf8] sm:$0xf]
    %v1211 = vld [vmem:[%s2 + $0xfc] sm:$0xf]
    %v1212 = vld [vmem:[%s2 + $0x100] sm:$0xf]
    %v1213 = vld [vmem:[%s2 + $0x104] sm:$0xf]
    %v1214 = vld [vmem:[%s2 + $0x108] sm:$0xf]
    %v1215 = vld [vmem:[%s2 + $0x10c] sm:$0xf]
    %v1216 = vld [vmem:[%s2 + $0x110] sm:$0xf]
    %v1217 = vld [vmem:[%s2 + $0x114] sm:$0xf]
    %v1218 = vld [vmem:[%s2 + $0x118] sm:$0xf]
    %v1219 = vld [vmem:[%s2 + $0x11c] sm:$0xf]
    %v1220 = vld [vmem:[%s2 + $0x120] sm:$0xf]
    %v1221 = vld [vmem:[%s2 + $0x124] sm:$0xf]
    %v1222 = vld [vmem:[%s2 + $0x128] sm:$0xf]
    %v1223 = vld [vmem:[%s2 + $0x12c] sm:$0xf]
    %v1224 = vld [vmem:[%s2 + $0x130] sm:$0xf]
    %v1225 = vld [vmem:[%s2 + $0x134] sm:$0xf]
    %v1226 = vld [vmem:[%s2 + $0x138] sm:$0xf]
    %v1227 = vld [vmem:[%s2 + $0x13c] sm:$0xf]
    %v1228 = vld [vmem:[%s2 + $0x140] sm:$0xf]
    %v1229 = vld [vmem:[%s2 + $0x144] sm:$0xf]
    %v1230 = vld [vmem:[%s2 + $0x148] sm:$0xf]
    %v1231 = vld [vmem:[%s2 + $0x14c] sm:$0xf]
    %v1232 = vld [vmem:[%s2 + $0x150] sm:$0xf]
    %v1233 = vld [vmem:[%s2 + $0x154] sm:$0xf]
    %v1234 = vld [vmem:[%s2 + $0x158] sm:$0xf]
    %v1235 = vld [vmem:[%s2 + $0x15c] sm:$0xf]
    %v1236 = vld [vmem:[%s2 + $0x160] sm:$0xf]
    %v1237 = vld [vmem:[%s2 + $0x164] sm:$0xf]
    %v1238 = vld [vmem:[%s2 + $0x168] sm:$0xf]
    %v1239 = vld [vmem:[%s2 + $0x16c] sm:$0xf]
    %v1240 = vld [vmem:[%s2 + $0x170] sm:$0xf]
    %v1241 = vld [vmem:[%s2 + $0x174] sm:$0xf]
    %v1242 = vld [vmem:[%s2 + $0x178] sm:$0xf]
    %v1243 = vld [vmem:[%s2 + $0x17c] sm:$0xf]
    %v1244 = vld [vmem:[%s2 + $0x180] sm:$0xf]
    %v1245 = vld [vmem:[%s2 + $0x184] sm:$0xf]
    %v1246 = vld [vmem:[%s2 + $0x188] sm:$0xf]
    %v1247 = vld [vmem:[%s2 + $0x18c] sm:$0xf]
    %v1248 = vld [vmem:[%s2 + $0x190] sm:$0xf]
    %v1249 = vld [vmem:[%s2 + $0x194] sm:$0xf]
    %v1250 = vld [vmem:[%s2 + $0x198] sm:$0xf]
    %v1251 = vld [vmem:[%s2 + $0x19c] sm:$0xf]
    %v1252 = vld [vmem:[%s2 + $0x1a0] sm:$0xf]
    %v1253 = vld [vmem:[%s2 + $0x1a4] sm:$0xf]
    %v1254 = vld [vmem:[%s2 + $0x1a8] sm:$0xf]
    %v1255 = vld [vmem:[%s2 + $0x1ac] sm:$0xf]
    %v1256 = vld [vmem:[%s2 + $0x1b0] sm:$0xf]
    %v1257 = vld [vmem:[%s2 + $0x1b4] sm:$0xf]
    %v1258 = vld [vmem:[%s2 + $0x1b8] sm:$0xf]
    %v1259 = vld [vmem:[%s2 + $0x1bc] sm:$0xf]
    %v1260 = vld [vmem:[%s2 + $0x1c0] sm:$0xf]
    %v1261 = vld [vmem:[%s2 + $0x1c4] sm:$0xf]
    %v1262 = vld [vmem:[%s2 + $0x1c8] sm:$0xf]
    %v1263 = vld [vmem:[%s2 + $0x1cc] sm:$0xf]
    %v1264 = vld [vmem:[%s2 + $0x1d0] sm:$0xf]
    %v1265 = vld [vmem:[%s2 + $0x1d4] sm:$0xf]
    %v1266 = vld [vmem:[%s2 + $0x1d8] sm:$0xf]
    %v1267 = vld [vmem:[%s2 + $0x1dc] sm:$0xf]
    %v1268 = vld [vmem:[%s2 + $0x1e0] sm:$0xf]
    %v1269 = vld [vmem:[%s2 + $0x1e4] sm:$0xf]
    %v1270 = vld [vmem:[%s2 + $0x1e8] sm:$0xf]
    %v1271 = vld [vmem:[%s2 + $0x1ec] sm:$0xf]
    %v1272 = vld [vmem:[%s2 + $0x1f0] sm:$0xf]
    %v1273 = vld [vmem:[%s2 + $0x1f4] sm:$0xf]
    %v1274 = vld [vmem:[%s2 + $0x1f8] sm:$0xf]
    %v1275 = vld [vmem:[%s2 + $0x1fc] sm:$0xf]
    %v1276 = vld [vmem:[%s2 + $0x200] sm:$0xf]
    %v1277 = vld [vmem:[%s2 + $0x204] sm:$0xf]
    %v1278 = vld [vmem:[%s2 + $0x208] sm:$0xf]
    %v1279 = vld [vmem:[%s2 + $0x20c] sm:$0xf]
    %v1280 = vld [vmem:[%s2 + $0x210] sm:$0xf]
    %v1281 = vld [vmem:[%s2 + $0x214] sm:$0xf]
    %v1282 = vld [vmem:[%s2 + $0x218] sm:$0xf]
    %v1283 = vld [vmem:[%s2 + $0x21c] sm:$0xf]
    %v1284 = vld [vmem:[%s2 + $0x220] sm:$0xf]
    %v1285 = vld [vmem:[%s2 + $0x224] sm:$0xf]
    %v1286 = vld [vmem:[%s2 + $0x228] sm:$0xf]
    %v1287 = vld [vmem:[%s2 + $0x22c] sm:$0xf]
    %v1288 = vld [vmem:[%s2 + $0x230] sm:$0xf]
    %v1289 = vld [vmem:[%s2 + $0x234] sm:$0xf]
    %v1290 = vld [vmem:[%s2 + $0x238] sm:$0xf]
    %v1291 = vld [vmem:[%s2 + $0x23c] sm:$0xf]
    %v1436 = vunpack.c.l.b16 %v1148
    %v1437 = vunpack.c.l.b16 %v1149
    %v1438 = vunpack.c.l.b16 %v1150
    %v1439 = vunpack.c.l.b16 %v1151
    %v1440 = vunpack.c.l.b16 %v1152
    %v1441 = vunpack.c.l.b16 %v1153
    %v1442 = vunpack.c.l.b16 %v1154
    %v1443 = vunpack.c.l.b16 %v1155
    %v1444 = vunpack.c.l.b16 %v1156
    %v1445 = vunpack.c.l.b16 %v1157
    %v1446 = vunpack.c.l.b16 %v1158
    %v1447 = vunpack.c.l.b16 %v1159
    %v1448 = vunpack.c.l.b16 %v1160
    %v1449 = vunpack.c.l.b16 %v1161
    %v1450 = vunpack.c.l.b16 %v1162
    %v1451 = vunpack.c.l.b16 %v1163
    %v1452 = vunpack.c.l.b16 %v1164
    %v1453 = vunpack.c.l.b16 %v1165
    %v1454 = vunpack.c.l.b16 %v1166
    %v1455 = vunpack.c.l.b16 %v1167
    %v1456 = vunpack.c.l.b16 %v1168
    %v1457 = vunpack.c.l.b16 %v1169
    %v1458 = vunpack.c.l.b16 %v1170
    %v1459 = vunpack.c.l.b16 %v1171
    %v1460 = vunpack.c.l.b16 %v1172
    %v1461 = vunpack.c.l.b16 %v1173
    %v1462 = vunpack.c.l.b16 %v1174
    %v1463 = vunpack.c.l.b16 %v1175
    %v1464 = vunpack.c.l.b16 %v1176
    %v1465 = vunpack.c.l.b16 %v1177
    %v1466 = vunpack.c.l.b16 %v1178
    %v1467 = vunpack.c.l.b16 %v1179
    %v1468 = vunpack.c.l.b16 %v1180
    %v1469 = vunpack.c.l.b16 %v1181
    %v1470 = vunpack.c.l.b16 %v1182
    %v1471 = vunpack.c.l.b16 %v1183
    %v1472 = vunpack.c.l.b16 %v1184
    %v1473 = vunpack.c.l.b16 %v1185
    %v1474 = vunpack.c.l.b16 %v1186
    %v1475 = vunpack.c.l.b16 %v1187
    %v1476 = vunpack.c.l.b16 %v1188
    %v1477 = vunpack.c.l.b16 %v1189
    %v1478 = vunpack.c.l.b16 %v1190
    %v1479 = vunpack.c.l.b16 %v1191
    %v1480 = vunpack.c.l.b16 %v1192
    %v1481 = vunpack.c.l.b16 %v1193
    %v1482 = vunpack.c.l.b16 %v1194
    %v1483 = vunpack.c.l.b16 %v1195
    %v1484 = vunpack.c.l.b16 %v1196
    %v1485 = vunpack.c.l.b16 %v1197
    %v1486 = vunpack.c.l.b16 %v1198
    %v1487 = vunpack.c.l.b16 %v1199
    %v1488 = vunpack.c.l.b16 %v1200
    %v1489 = vunpack.c.l.b16 %v1201
    %v1490 = vunpack.c.l.b16 %v1202
    %v1491 = vunpack.c.l.b16 %v1203
    %v1492 = vunpack.c.l.b16 %v1204
    %v1493 = vunpack.c.l.b16 %v1205
    %v1494 = vunpack.c.l.b16 %v1206
    %v1495 = vunpack.c.l.b16 %v1207
    %v1496 = vunpack.c.l.b16 %v1208
    %v1497 = vunpack.c.l.b16 %v1209
    %v1498 = vunpack.c.l.b16 %v1210
    %v1499 = vunpack.c.l.b16 %v1211
    %v1500 = vunpack.c.l.b16 %v1212
    %v1501 = vunpack.c.l.b16 %v1213
    %v1502 = vunpack.c.l.b16 %v1214
    %v1503 = vunpack.c.l.b16 %v1215
    %v1504 = vunpack.c.l.b16 %v1216
    %v1505 = vunpack.c.l.b16 %v1217
    %v1506 = vunpack.c.l.b16 %v1218
    %v1507 = vunpack.c.l.b16 %v1219
    %v1508 = vunpack.c.l.b16 %v1220
    %v1509 = vunpack.c.l.b16 %v1221
    %v1510 = vunpack.c.l.b16 %v1222
    %v1511 = vunpack.c.l.b16 %v1223
    %v1512 = vunpack.c.l.b16 %v1224
    %v1513 = vunpack.c.l.b16 %v1225
    %v1514 = vunpack.c.l.b16 %v1226
    %v1515 = vunpack.c.l.b16 %v1227
    %v1516 = vunpack.c.l.b16 %v1228
    %v1517 = vunpack.c.l.b16 %v1229
    %v1518 = vunpack.c.l.b16 %v1230
    %v1519 = vunpack.c.l.b16 %v1231
    %v1520 = vunpack.c.l.b16 %v1232
    %v1521 = vunpack.c.l.b16 %v1233
    %v1522 = vunpack.c.l.b16 %v1234
    %v1523 = vunpack.c.l.b16 %v1235
    %v1524 = vunpack.c.l.b16 %v1236
    %v1525 = vunpack.c.l.b16 %v1237
    %v1526 = vunpack.c.l.b16 %v1238
    %v1527 = vunpack.c.l.b16 %v1239
    %v1528 = vunpack.c.l.b16 %v1240
    %v1529 = vunpack.c.l.b16 %v1241
    %v1530 = vunpack.c.l.b16 %v1242
    %v1531 = vunpack.c.l.b16 %v1243
    %v1532 = vunpack.c.l.b16 %v1244
    %v1533 = vunpack.c.l.b16 %v1245
    %v1534 = vunpack.c.l.b16 %v1246
    %v1535 = vunpack.c.l.b16 %v1247
    %v1536 = vunpack.c.l.b16 %v1248
    %v1537 = vunpack.c.l.b16 %v1249
    %v1538 = vunpack.c.l.b16 %v1250
    %v1539 = vunpack.c.l.b16 %v1251
    %v1540 = vunpack.c.l.b16 %v1252
    %v1541 = vunpack.c.l.b16 %v1253
    %v1542 = vunpack.c.l.b16 %v1254
    %v1543 = vunpack.c.l.b16 %v1255
    %v1544 = vunpack.c.l.b16 %v1256
    %v1545 = vunpack.c.l.b16 %v1257
    %v1546 = vunpack.c.l.b16 %v1258
    %v1547 = vunpack.c.l.b16 %v1259
    %v1548 = vunpack.c.l.b16 %v1260
    %v1549 = vunpack.c.l.b16 %v1261
    %v1550 = vunpack.c.l.b16 %v1262
    %v1551 = vunpack.c.l.b16 %v1263
    %v1552 = vunpack.c.l.b16 %v1264
    %v1553 = vunpack.c.l.b16 %v1265
    %v1554 = vunpack.c.l.b16 %v1266
    %v1555 = vunpack.c.l.b16 %v1267
    %v1556 = vunpack.c.l.b16 %v1268
    %v1557 = vunpack.c.l.b16 %v1269
    %v1558 = vunpack.c.l.b16 %v1270
    %v1559 = vunpack.c.l.b16 %v1271
    %v1560 = vunpack.c.l.b16 %v1272
    %v1561 = vunpack.c.l.b16 %v1273
    %v1562 = vunpack.c.l.b16 %v1274
    %v1563 = vunpack.c.l.b16 %v1275
    %v1564 = vunpack.c.l.b16 %v1276
    %v1565 = vunpack.c.l.b16 %v1277
    %v1566 = vunpack.c.l.b16 %v1278
    %v1567 = vunpack.c.l.b16 %v1279
    %v1568 = vunpack.c.l.b16 %v1280
    %v1569 = vunpack.c.l.b16 %v1281
    %v1570 = vunpack.c.l.b16 %v1282
    %v1571 = vunpack.c.l.b16 %v1283
    %v1572 = vunpack.c.l.b16 %v1284
    %v1573 = vunpack.c.l.b16 %v1285
    %v1574 = vunpack.c.l.b16 %v1286
    %v1575 = vunpack.c.l.b16 %v1287
    %v1576 = vunpack.c.l.b16 %v1288
    %v1577 = vunpack.c.l.b16 %v1289
    %v1578 = vunpack.c.l.b16 %v1290
    %v1579 = vunpack.c.l.b16 %v1291
    %v1580 = vpack.c.b16 %v1437, %v1436
    %v1581 = vpack.c.b16 %v1439, %v1438
    %v1582 = vpack.c.b16 %v1441, %v1440
    %v1583 = vpack.c.b16 %v1443, %v1442
    %v1584 = vpack.c.b16 %v1445, %v1444
    %v1585 = vpack.c.b16 %v1447, %v1446
    %v1586 = vpack.c.b16 %v1449, %v1448
    %v1587 = vpack.c.b16 %v1451, %v1450
    %v1588 = vpack.c.b16 %v1453, %v1452
    %v1589 = vpack.c.b16 %v1455, %v1454
    %v1590 = vpack.c.b16 %v1457, %v1456
    %v1591 = vpack.c.b16 %v1459, %v1458
    %v1592 = vpack.c.b16 %v1461, %v1460
    %v1593 = vpack.c.b16 %v1463, %v1462
    %v1594 = vpack.c.b16 %v1465, %v1464
    %v1595 = vpack.c.b16 %v1467, %v1466
    %v1596 = vpack.c.b16 %v1469, %v1468
    %v1597 = vpack.c.b16 %v1471, %v1470
    %v1598 = vpack.c.b16 %v1473, %v1472
    %v1599 = vpack.c.b16 %v1475, %v1474
    %v1600 = vpack.c.b16 %v1477, %v1476
    %v1601 = vpack.c.b16 %v1479, %v1478
    %v1602 = vpack.c.b16 %v1481, %v1480
    %v1603 = vpack.c.b16 %v1483, %v1482
    %v1604 = vpack.c.b16 %v1485, %v1484
    %v1605 = vpack.c.b16 %v1487, %v1486
    %v1606 = vpack.c.b16 %v1489, %v1488
    %v1607 = vpack.c.b16 %v1491, %v1490
    %v1608 = vpack.c.b16 %v1493, %v1492
    %v1609 = vpack.c.b16 %v1495, %v1494
    %v1610 = vpack.c.b16 %v1497, %v1496
    %v1611 = vpack.c.b16 %v1499, %v1498
    %v1612 = vpack.c.b16 %v1501, %v1500
    %v1613 = vpack.c.b16 %v1503, %v1502
    %v1614 = vpack.c.b16 %v1505, %v1504
    %v1615 = vpack.c.b16 %v1507, %v1506
    %v1616 = vpack.c.b16 %v1509, %v1508
    %v1617 = vpack.c.b16 %v1511, %v1510
    %v1618 = vpack.c.b16 %v1513, %v1512
    %v1619 = vpack.c.b16 %v1515, %v1514
    %v1620 = vpack.c.b16 %v1517, %v1516
    %v1621 = vpack.c.b16 %v1519, %v1518
    %v1622 = vpack.c.b16 %v1521, %v1520
    %v1623 = vpack.c.b16 %v1523, %v1522
    %v1624 = vpack.c.b16 %v1525, %v1524
    %v1625 = vpack.c.b16 %v1527, %v1526
    %v1626 = vpack.c.b16 %v1529, %v1528
    %v1627 = vpack.c.b16 %v1531, %v1530
    %v1628 = vpack.c.b16 %v1533, %v1532
    %v1629 = vpack.c.b16 %v1535, %v1534
    %v1630 = vpack.c.b16 %v1537, %v1536
    %v1631 = vpack.c.b16 %v1539, %v1538
    %v1632 = vpack.c.b16 %v1541, %v1540
    %v1633 = vpack.c.b16 %v1543, %v1542
    %v1634 = vpack.c.b16 %v1545, %v1544
    %v1635 = vpack.c.b16 %v1547, %v1546
    %v1636 = vpack.c.b16 %v1549, %v1548
    %v1637 = vpack.c.b16 %v1551, %v1550
    %v1638 = vpack.c.b16 %v1553, %v1552
    %v1639 = vpack.c.b16 %v1555, %v1554
    %v1640 = vpack.c.b16 %v1557, %v1556
    %v1641 = vpack.c.b16 %v1559, %v1558
    %v1642 = vpack.c.b16 %v1561, %v1560
    %v1643 = vpack.c.b16 %v1563, %v1562
    %v1644 = vpack.c.b16 %v1565, %v1564
    %v1645 = vpack.c.b16 %v1567, %v1566
    %v1646 = vpack.c.b16 %v1569, %v1568
    %v1647 = vpack.c.b16 %v1571, %v1570
    %v1648 = vpack.c.b16 %v1573, %v1572
    %v1649 = vpack.c.b16 %v1575, %v1574
    %v1650 = vpack.c.b16 %v1577, %v1576
    %v1651 = vpack.c.b16 %v1579, %v1578
    %1724 = vmatprep.subr.bf16.mxu0 0
    %1725 = vmatpush1.bf16.msra.mxu0 %v1580
    %1726 = vmatprep.subr.bf16.mxu0 0
    %1727 = vmatpush1.bf16.msra.mxu0 %v1581
    %1728 = vmatprep.subr.bf16.mxu0 0
    %1729 = vmatpush1.bf16.msra.mxu0 %v1582
    %1730 = vmatprep.subr.bf16.mxu0 0
    %1731 = vmatpush1.bf16.msra.mxu0 %v1583
    %1732 = vmatprep.subr.bf16.mxu0 0
    %1733 = vmatpush1.bf16.msra.mxu0 %v1584
    %1734 = vmatprep.subr.bf16.mxu0 0
    %1735 = vmatpush1.bf16.msra.mxu0 %v1585
    %1736 = vmatprep.subr.bf16.mxu0 0
    %1737 = vmatpush1.bf16.msra.mxu0 %v1586
    %1738 = vmatprep.subr.bf16.mxu0 0
    %1739 = vmatpush1.bf16.msra.mxu0 %v1587
    %1740 = vmatprep.subr.bf16.mxu0 0
    %1741 = vmatpush1.bf16.msra.mxu0 %v1588
    %1742 = vmatprep.subr.bf16.mxu0 0
    %1743 = vmatpush1.bf16.msra.mxu0 %v1589
    %1744 = vmatprep.subr.bf16.mxu0 0
    %1745 = vmatpush1.bf16.msra.mxu0 %v1590
    %1746 = vmatprep.subr.bf16.mxu0 0
    %1747 = vmatpush1.bf16.msra.mxu0 %v1591
    %1748 = vmatprep.subr.bf16.mxu0 0
    %1749 = vmatpush1.bf16.msra.mxu0 %v1592
    %1750 = vmatprep.subr.bf16.mxu0 0
    %1751 = vmatpush1.bf16.msra.mxu0 %v1593
    %1752 = vmatprep.subr.bf16.mxu0 0
    %1753 = vmatpush1.bf16.msra.mxu0 %v1594
    %1754 = vmatprep.subr.bf16.mxu0 0
    %1755 = vmatpush1.bf16.msra.mxu0 %v1595
    %1756 = vmatprep.mubr.bf16.mxu0 %v1131
    %1757 = vmatmul.mubr.bf16.gmra.mrb[0].mxu0 %v1130
    %v1758 = vpop.f32.mrb[0].mxu0
    %v1759 = vadd.f32 0.0, %v1758
    %v1760 = vpop.f32.mrb[0].mxu0
    %v1761 = vpop.f32.mrb[0].mxu0
    %v1762 = vadd.f32 0.0, %v1761
    %v1763 = vpop.f32.mrb[0].mxu0
    %1764 = vmatprep.mubr.bf16.mxu0 %v1140
    %1765 = vmatmul.mubr.bf16.gmra.mrb[0].mxu0 %v1139
    %v1766 = vpop.f32.mrb[0].mxu0
    %v1767 = vadd.f32 0.0, %v1766
    %v1768 = vpop.f32.mrb[0].mxu0
    %v1769 = vpop.f32.mrb[0].mxu0
    %v1770 = vadd.f32 0.0, %v1769
    %v1771 = vpop.f32.mrb[0].mxu0
    %1772 = vdwg.mxu0
    %1773 = vmatprep.subr.bf16.mxu0 0
    %1774 = vmatpush1.bf16.msra.mxu0 %v1596
    %1775 = vmatprep.subr.bf16.mxu0 0
    %1776 = vmatpush1.bf16.msra.mxu0 %v1597
    %1777 = vmatprep.subr.bf16.mxu0 0
    %1778 = vmatpush1.bf16.msra.mxu0 %v1598
    %1779 = vmatprep.subr.bf16.mxu0 0
    %1780 = vmatpush1.bf16.msra.mxu0 %v1599
    %1781 = vmatprep.subr.bf16.mxu0 0
    %1782 = vmatpush1.bf16.msra.mxu0 %v1600
    %1783 = vmatprep.subr.bf16.mxu0 0
    %1784 = vmatpush1.bf16.msra.mxu0 %v1601
    %1785 = vmatprep.subr.bf16.mxu0 0
    %1786 = vmatpush1.bf16.msra.mxu0 %v1602
    %1787 = vmatprep.subr.bf16.mxu0 0
    %1788 = vmatpush1.bf16.msra.mxu0 %v1603
    %1789 = vmatprep.subr.bf16.mxu0 0
    %1790 = vmatpush1.bf16.msra.mxu0 %v1604
    %1791 = vmatprep.subr.bf16.mxu0 0
    %1792 = vmatpush1.bf16.msra.mxu0 %v1605
    %1793 = vmatprep.subr.bf16.mxu0 0
    %1794 = vmatpush1.bf16.msra.mxu0 %v1606
    %1795 = vmatprep.subr.bf16.mxu0 0
    %1796 = vmatpush1.bf16.msra.mxu0 %v1607
    %1797 = vmatprep.subr.bf16.mxu0 0
    %1798 = vmatpush1.bf16.msra.mxu0 %v1608
    %1799 = vmatprep.subr.bf16.mxu0 0
    %1800 = vmatpush1.bf16.msra.mxu0 %v1609
    %1801 = vmatprep.subr.bf16.mxu0 0
    %1802 = vmatpush1.bf16.msra.mxu0 %v1610
    %1803 = vmatprep.subr.bf16.mxu0 0
    %1804 = vmatpush1.bf16.msra.mxu0 %v1611
    %1805 = vmatprep.mubr.bf16.mxu0 %v1133
    %1806 = vmatmul.mubr.bf16.gmra.mrb[0].mxu0 %v1132
    %v1807 = vpop.f32.mrb[0].mxu0
    %v1808 = vadd.f32 %v1759, %v1807
    %v1809 = vpop.f32.mrb[0].mxu0
    %v1810 = vpop.f32.mrb[0].mxu0
    %v1811 = vadd.f32 %v1762, %v1810
    %v1812 = vpop.f32.mrb[0].mxu0
    %1813 = vmatprep.mubr.bf16.mxu0 %v1142
    %1814 = vmatmul.mubr.bf16.gmra.mrb[0].mxu0 %v1141
    %v1815 = vpop.f32.mrb[0].mxu0
    %v1816 = vadd.f32 %v1767, %v1815
    %v1817 = vpop.f32.mrb[0].mxu0
    %v1818 = vpop.f32.mrb[0].mxu0
    %v1819 = vadd.f32 %v1770, %v1818
    %v1820 = vpop.f32.mrb[0].mxu0
    %1821 = vdwg.mxu0
    %1822 = vmatprep.subr.bf16.mxu0 0
    %1823 = vmatpush1.bf16.msra.mxu0 %v1612
    %1824 = vmatprep.subr.bf16.mxu0 0
    %1825 = vmatpush1.bf16.msra.mxu0 %v1613
    %1826 = vmatprep.subr.bf16.mxu0 0
    %1827 = vmatpush1.bf16.msra.mxu0 %v1614
    %1828 = vmatprep.subr.bf16.mxu0 0
    %1829 = vmatpush1.bf16.msra.mxu0 %v1615
    %1830 = vmatprep.subr.bf16.mxu0 0
    %1831 = vmatpush1.bf16.msra.mxu0 %v1616
    %1832 = vmatprep.subr.bf16.mxu0 0
    %1833 = vmatpush1.bf16.msra.mxu0 %v1617
    %1834 = vmatprep.subr.bf16.mxu0 0
    %1835 = vmatpush1.bf16.msra.mxu0 %v1618
    %1836 = vmatprep.subr.bf16.mxu0 0
    %1837 = vmatpush1.bf16.msra.mxu0 %v1619
    %1838 = vmatprep.subr.bf16.mxu0 0
    %1839 = vmatpush1.bf16.msra.mxu0 %v1620
    %1840 = vmatprep.subr.bf16.mxu0 0
    %1841 = vmatpush1.bf16.msra.mxu0 %v1621
    %1842 = vmatprep.subr.bf16.mxu0 0
    %1843 = vmatpush1.bf16.msra.mxu0 %v1622
    %1844 = vmatprep.subr.bf16.mxu0 0
    %1845 = vmatpush1.bf16.msra.mxu0 %v1623
    %1846 = vmatprep.subr.bf16.mxu0 0
    %1847 = vmatpush1.bf16.msra.mxu0 %v1624
    %1848 = vmatprep.subr.bf16.mxu0 0
    %1849 = vmatpush1.bf16.msra.mxu0 %v1625
    %1850 = vmatprep.subr.bf16.mxu0 0
    %1851 = vmatpush1.bf16.msra.mxu0 %v1626
    %1852 = vmatprep.subr.bf16.mxu0 0
    %1853 = vmatpush1.bf16.msra.mxu0 %v1627
    %1854 = vmatprep.mubr.bf16.mxu0 %v1135
    %1855 = vmatmul.mubr.bf16.gmra.mrb[0].mxu0 %v1134
    %v1856 = vpop.f32.mrb[0].mxu0
    %v1857 = vadd.f32 %v1808, %v1856
    %v1858 = vpop.f32.mrb[0].mxu0
    %v1859 = vpop.f32.mrb[0].mxu0
    %v1860 = vadd.f32 %v1811, %v1859
    %v1861 = vpop.f32.mrb[0].mxu0
    %1862 = vmatprep.mubr.bf16.mxu0 %v1144
    %1863 = vmatmul.mubr.bf16.gmra.mrb[0].mxu0 %v1143
    %v1864 = vpop.f32.mrb[0].mxu0
    %v1865 = vadd.f32 %v1816, %v1864
    %v1866 = vpop.f32.mrb[0].mxu0
    %v1867 = vpop.f32.mrb[0].mxu0
    %v1868 = vadd.f32 %v1819, %v1867
    %v1869 = vpop.f32.mrb[0].mxu0
    %1870 = vdwg.mxu0
    %1871 = vmatprep.subr.bf16.mxu0 0
    %1872 = vmatpush1.bf16.msra.mxu0 %v1628
    %1873 = vmatprep.subr.bf16.mxu0 0
    %1874 = vmatpush1.bf16.msra.mxu0 %v1629
    %1875 = vmatprep.subr.bf16.mxu0 0
    %1876 = vmatpush1.bf16.msra.mxu0 %v1630
    %1877 = vmatprep.subr.bf16.mxu0 0
    %1878 = vmatpush1.bf16.msra.mxu0 %v1631
    %1879 = vmatprep.subr.bf16.mxu0 0
    %1880 = vmatpush1.bf16.msra.mxu0 %v1632
    %1881 = vmatprep.subr.bf16.mxu0 0
    %1882 = vmatpush1.bf16.msra.mxu0 %v1633
    %1883 = vmatprep.subr.bf16.mxu0 0
    %1884 = vmatpush1.bf16.msra.mxu0 %v1634
    %1885 = vmatprep.subr.bf16.mxu0 0
    %1886 = vmatpush1.bf16.msra.mxu0 %v1635
    %1887 = vmatprep.subr.bf16.mxu0 0
    %1888 = vmatpush1.bf16.msra.mxu0 %v1636
    %1889 = vmatprep.subr.bf16.mxu0 0
    %1890 = vmatpush1.bf16.msra.mxu0 %v1637
    %1891 = vmatprep.subr.bf16.mxu0 0
    %1892 = vmatpush1.bf16.msra.mxu0 %v1638
    %1893 = vmatprep.subr.bf16.mxu0 0
    %1894 = vmatpush1.bf16.msra.mxu0 %v1639
    %1895 = vmatprep.subr.bf16.mxu0 0
    %1896 = vmatpush1.bf16.msra.mxu0 %v1640
    %1897 = vmatprep.subr.bf16.mxu0 0
    %1898 = vmatpush1.bf16.msra.mxu0 %v1641
    %1899 = vmatprep.subr.bf16.mxu0 0
    %1900 = vmatpush1.bf16.msra.mxu0 %v1642
    %1901 = vmatprep.subr.bf16.mxu0 0
    %1902 = vmatpush1.bf16.msra.mxu0 %v1643
    %1903 = vmatprep.mubr.bf16.mxu0 %v1137
    %1904 = vmatmul.mubr.bf16.gmra.mrb[0].mxu0 %v1136
    %v1905 = vpop.f32.mrb[0].mxu0
    %v1906 = vadd.f32 %v1857, %v1905
    %v1907 = vpop.f32.mrb[0].mxu0
    %v1908 = vpop.f32.mrb[0].mxu0
    %v1909 = vadd.f32 %v1860, %v1908
    %v1910 = vpop.f32.mrb[0].mxu0
    %1911 = vmatprep.mubr.bf16.mxu0 %v1146
    %1912 = vmatmul.mubr.bf16.gmra.mrb[0].mxu0 %v1145
    %v1913 = vpop.f32.mrb[0].mxu0
    %v1914 = vadd.f32 %v1865, %v1913
    %v1915 = vpop.f32.mrb[0].mxu0
    %v1916 = vpop.f32.mrb[0].mxu0
    %v1917 = vadd.f32 %v1868, %v1916
    %v1918 = vpop.f32.mrb[0].mxu0
    %1919 = vdwg.mxu0
    %1920 = vmatprep.subr.bf16.mxu0 0
    %1921 = vmatpush1.bf16.msra.mxu0 %v1644
    %1922 = vmatprep.subr.bf16.mxu0 0
    %1923 = vmatpush1.bf16.msra.mxu0 %v1645
    %1924 = vmatprep.subr.bf16.mxu0 0
    %1925 = vmatpush1.bf16.msra.mxu0 %v1646
    %1926 = vmatprep.subr.bf16.mxu0 0
    %1927 = vmatpush1.bf16.msra.mxu0 %v1647
    %1928 = vmatprep.subr.bf16.mxu0 0
    %1929 = vmatpush1.bf16.msra.mxu0 %v1648
    %1930 = vmatprep.subr.bf16.mxu0 0
    %1931 = vmatpush1.bf16.msra.mxu0 %v1649
    %1932 = vmatprep.subr.bf16.mxu0 0
    %1933 = vmatpush1.bf16.msra.mxu0 %v1650
    %1934 = vmatprep.subr.bf16.mxu0 0
    %1935 = vmatpush1.bf16.msra.mxu0 %v1651
    %1936 = vmatprep.subr.bf16.mxu0 0
    %1937 = vmatpush1.bf16.msra.mxu0 0
    %1938 = vmatprep.subr.bf16.mxu0 0
    %1939 = vmatpush1.bf16.msra.mxu0 0
    %1940 = vmatprep.subr.bf16.mxu0 0
    %1941 = vmatpush1.bf16.msra.mxu0 0
    %1942 = vmatprep.subr.bf16.mxu0 0
    %1943 = vmatpush1.bf16.msra.mxu0 0
    %1944 = vmatprep.subr.bf16.mxu0 0
    %1945 = vmatpush1.bf16.msra.mxu0 0
    %1946 = vmatprep.subr.bf16.mxu0 0
    %1947 = vmatpush1.bf16.msra.mxu0 0
    %1948 = vmatprep.subr.bf16.mxu0 0
    %1949 = vmatpush1.bf16.msra.mxu0 0
    %1950 = vmatprep.subr.bf16.mxu0 0
    %1951 = vmatpush1.bf16.msra.mxu0 0
    %1952 = vmatprep.mubr.bf16.mxu0 0
    %1953 = vmatmul.mubr.bf16.gmra.mrb[0].mxu0 %v1138
    %v1954 = vpop.f32.mrb[0].mxu0
    %v1955 = vadd.f32 %v1906, %v1954
    %v1956 = vpop.f32.mrb[0].mxu0
    %v1957 = vpop.f32.mrb[0].mxu0
    %v1958 = vadd.f32 %v1909, %v1957
    %v1959 = vpop.f32.mrb[0].mxu0
    %1960 = vmatprep.mubr.bf16.mxu0 0
    %1961 = vmatmul.mubr.bf16.gmra.mrb[0].mxu0 %v1147
    %v1962 = vpop.f32.mrb[0].mxu0
    %v1963 = vadd.f32 %v1914, %v1962
    %v1964 = vpop.f32.mrb[0].mxu0
    %v1965 = vpop.f32.mrb[0].mxu0
    %v1966 = vadd.f32 %v1917, %v1965
    %v1967 = vpop.f32.mrb[0].mxu0
    %1968 = vdwg.mxu0
    %1973 = vrot.lane.b32.xlu0 %v1955, 64
    %v1974 = vpop.permute.xlu0 %1973
    %1975 = vrot.lane.b32.xlu0 %v1958, 64
    %v1976 = vpop.permute.xlu0 %1975
    %1977 = vrot.lane.b32.xlu0 %v1963, 64
    %v1978 = vpop.permute.xlu0 %1977
    %1979 = vrot.lane.b32.xlu0 %v1966, 64
    %v1980 = vpop.permute.xlu0 %1979
    %vm1985 = vcmask 523264
    %v1986 = vsel %vm1985, %v1116, %v1974
    %v1987 = vsel %vm1985, %v1119, %v1976
    %v1988 = vsel %vm1985, %v1124, %v1978
    %v1989 = vsel %vm1985, %v1127, %v1980
    %v1990 = vld [vmem:[%s3] sm:$0x1]
    %v1992 = vlaneseq
    %v1993 = vshrl.u32 %v1992, 7
    %v1994 = vsub.s32 0, %v1993
    %v1995 = vrot.slane %v1990, %v1994
    %v1997 = vadd.f32 %v1986, %v1995
    %v1998 = vadd.f32 %v1987, %v1995
    %v1999 = vadd.f32 %v1988, %v1995
    %v2000 = vadd.f32 %v1989, %v1995
    %2001 = vst [vmem:[#allocation4] sm:$0xff] %v1997
    %2002 = vst [vmem:[#allocation4 + $0x8] sm:$0xff] %v1998
    %2003 = vst [vmem:[#allocation4 + $0x10] sm:$0xff] %v1999
    %2004 = vst [vmem:[#allocation4 + $0x18] sm:$0xff] %v2000
    %v2005 = vrot.slane %v1997, 4
    %v2006 = vmax.f32 %v1997, %v2005
    %v2007 = vrot.slane %v2006, 2
    %v2008 = vmax.f32 %v2006, %v2007
    %v2009 = vrot.slane %v2008, 1
    %v2010 = vmax.f32 %v2008, %v2009
    %v2011 = vrot.slane %v1998, 4
    %v2012 = vmax.f32 %v1998, %v2011
    %v2013 = vrot.slane %v2012, 2
    %v2014 = vmax.f32 %v2012, %v2013
    %v2015 = vrot.slane %v2014, 1
    %v2016 = vmax.f32 %v2014, %v2015
    %v2017 = vrot.slane %v1999, 4
    %v2018 = vmax.f32 %v1999, %v2017
    %v2019 = vrot.slane %v2018, 2
    %v2020 = vmax.f32 %v2018, %v2019
    %v2021 = vrot.slane %v2020, 1
    %v2022 = vmax.f32 %v2020, %v2021
    %v2023 = vrot.slane %v2000, 4
    %v2024 = vmax.f32 %v2000, %v2023
    %v2025 = vrot.slane %v2024, 2
    %v2026 = vmax.f32 %v2024, %v2025
    %v2027 = vrot.slane %v2026, 1
    %v2028 = vmax.f32 %v2026, %v2027
    %2029 = vst [vmem:[#allocation6] sm:$0x1] %v2010
    %2030 = vst [vmem:[#allocation6 + $0x1] sm:$0x1] %v2016
    %2031 = vst [vmem:[#allocation6 + $0x2] sm:$0x1] %v2022
    %2032 = vst [vmem:[#allocation6 + $0x3] sm:$0x1] %v2028
    // Predicated region
    $region18: #{tpu_custom_call.1} parent=1 // pred_check
      _
    $region19: #{tpu_custom_call.1} parent=1 // pred_check_branch
      %2034 = sbr.rel (0) target = $region21
    $region20: #{tpu_custom_call.1} parent=1 // pred_region
      %s2036 = ssub.s32 512, 512
      %2037 = vsyncadd [#allocation5], %s2036
      %s2038 = sshll.u32 [#allocation4], 4
      %s2039 = int_to_ptr.vmem [resolvable:$true] %s2038
      %2044 = dma.vmem_to_hbm [thread:$0]  %s2039, 512, %s4, [#allocation5], 128, 128, 8
    $region21: #{tpu_custom_call.1} parent=1 // pred_fallthru
      _
    // Predicated region
    $region22: #{tpu_custom_call.1} parent=1 // pred_check
      _
    $region23: #{tpu_custom_call.1} parent=1 // pred_check_branch
      %2046 = sbr.rel (0) target = $region25
    $region24: #{tpu_custom_call.1} parent=1 // pred_region
      %s2048 = ssub.s32 64, 64
      %2049 = vsyncadd [#allocation7], %s2048
      %s2050 = sshll.u32 [#allocation6], 4
      %s2051 = int_to_ptr.vmem [resolvable:$true] %s2050
      %2056 = dma.vmem_to_hbm [thread:$0]  %s2051, 64, %s5, [#allocation7], 16, 16, 1
    $region25: #{tpu_custom_call.1} parent=1 // pred_fallthru
      _
    // Predicated region
    $region26: #{tpu_custom_call.1} parent=1 // pred_check
      _
    $region27: #{tpu_custom_call.1} parent=1 // pred_check_branch
      %2058 = sbr.rel (0) target = $region29
    $region28: #{tpu_custom_call.1} parent=1 // pred_region
      %2059 = dma.done [#allocation5], 512
    $region29: #{tpu_custom_call.1} parent=1 // pred_fallthru
      _
    // Predicated region
    $region30: #{tpu_custom_call.1} parent=1 // pred_check
      _
    $region31: #{tpu_custom_call.1} parent=1 // pred_check_branch
      %2061 = sbr.rel (0) target = $region33
    $region32: #{tpu_custom_call.1} parent=1 // pred_region
      %2062 = dma.done [#allocation7], 64
    $region33: #{tpu_custom_call.1} parent=1 // pred_fallthru
      _
    %2063 = vsyncpa [#allocation5], 1
    %2064 = vsyncpa [#allocation7], 1

</llo_original>
